<compile_context>
chip_gen: v6e
topology: v6e:2x2x1
jax: 0.10.0
libtpu: 0.0.40
codegen_flags: <defaults>
</compile_context>

<pallas_src>
import functools

import jax
import jax.numpy as jnp
from jax import lax
from jax.experimental import pallas as pl
from jax.experimental.pallas import tpu as pltpu


# ----------------------------------------------------------------------------
# Hardware-aware helpers
# ----------------------------------------------------------------------------

def _tpu_vmem_capacity():
    """Physical VMEM bytes per core (generation-aware), conservative fallback."""
    try:
        info = pltpu.get_tpu_info()
        cap = getattr(info, "vmem_capacity_bytes", None)
        if cap:
            return int(cap)
    except Exception:
        pass
    return 64 << 20   # v7x per-core size: the most restrictive generation.


def _vmem_request(est_bytes, capacity):
    """Scoped-VMEM request: estimate * 1.5 headroom, floored at the 32 MiB
    default, capped at 85% of physical VMEM (leave compiler-internal scratch
    and pipelining headroom, especially on v7x's 64 MiB parts)."""
    return int(min(max(est_bytes * 1.5, 32 << 20), capacity * 0.85))


def _pick_tile_s(S, capacity):
    """Spatial tile: larger on 128 MiB parts (v5e/v6e), smaller on v7x.
    Never falls back to a single giant tile: ragged S is padded + masked."""
    target = 1024 if capacity >= (100 << 20) else 256
    if S <= target:
        return S
    best = None
    t = 16
    while t <= target:
        if S % t == 0:
            best = t
        t += 16
    return best if best is not None else target


# ----------------------------------------------------------------------------
# Pallas kernels
# ----------------------------------------------------------------------------

def _backbone_kernel(x_ref, w3_ref, b3_ref, w4_ref, b4_ref,
                     wl_ref, bl_ref, wa_ref, ba_ref,
                     gem_ref, lwsum_ref, *, tile_s, s_valid, ragged):
    """Fused backbone + local branch + both spatial reductions.

    Grid = (batch, spatial-split, spatial-tile); the last axis is a streaming
    reduction with resident accumulator outputs:
      gem_ref   : (1, 1, Gd) f32  running sum of relu(f4)^3  (GeM, p=3)
      lwsum_ref : (1, 1, Ld) f32  running sum of att * local (orth. fusion)
    Nothing of size O(S) is ever written back to HBM.
    """
    s_idx = pl.program_id(2)

    x = x_ref[0]                                        # [TS, Cin] bf16
    # Stage-3 / stage-4 1x1-conv proxies: MXU matmuls, f32 accumulation.
    f3 = jnp.maximum(
        jnp.dot(x, w3_ref[...], preferred_element_type=jnp.float32)
        + b3_ref[...], 0.0)
    f3b = f3.astype(jnp.bfloat16)
    f4 = jnp.maximum(
        jnp.dot(f3b, w4_ref[...], preferred_element_type=jnp.float32)
        + b4_ref[...], 0.0)

    # Local 1x1 conv + sigmoid spatial attention (N=1 projection as a VPU
    # dot + lane reduction -> no degenerate MXU matmul, no [M,1] HBM output).
    l = jnp.maximum(
        jnp.dot(f3b, wl_ref[...], preferred_element_type=jnp.float32)
        + bl_ref[...], 0.0)
    att = jax.nn.sigmoid(
        jnp.sum(l * wa_ref[...], axis=-1, keepdims=True) + ba_ref[...])
    lw = l * att                                        # [TS, Ld] f32

    # GeM partial sum, p = 3 (compile-time constant): two VPU multiplies
    # instead of exp/log through the single EUP slot.
    # TODO(synk): non-integer GeM p would need an exp/log power here.
    f4c = jnp.maximum(f4, 1e-6)
    xp = f4c * f4c * f4c                                # [TS, Gd] f32

    if ragged:
        base = (pl.program_id(1) * pl.num_programs(2) + s_idx) * tile_s
        rows = base + lax.broadcasted_iota(jnp.int32, (tile_s, 1), 0)
        valid = (rows < s_valid).astype(jnp.float32)
        xp = xp * valid
        lw = lw * valid

    @pl.when(s_idx == 0)
    def _():
        gem_ref[...] = jnp.zeros_like(gem_ref)
        lwsum_ref[...] = jnp.zeros_like(lwsum_ref)

    gem_ref[...] += jnp.sum(xp, axis=0, keepdims=True)[None]
    lwsum_ref[...] += jnp.sum(lw, axis=0, keepdims=True)[None]


def _head_kernel(gem_ref, lw_ref, wg_ref, bg_ref, wfl_ref, wfg_ref, bf_ref,
                 wc_ref, bc_ref, o_ref, *, inv_s):
    """Fused tail: GeM finalize -> global FC -> orthogonal-fusion finalize ->
    whitening FC -> classifier.  All per-batch [B, <=2*Ld] work, one launch.
    The [pooled | g] concat is a split weight matrix -> lane-dense stores."""
    gem_mean = gem_ref[...] * inv_s                      # [B, Gd], > 0
    g = jnp.exp(jnp.log(gem_mean) * (1.0 / 3.0))         # m ** (1/p), p = 3
    g_fc = (jnp.dot(g, wg_ref[...], preferred_element_type=jnp.float32)
            + bg_ref[...])                               # [B, Ld]

    # Orthogonal fusion finalize: projection is linear in l for fixed g, so
    # the spatial mean commutes with it -> only sum_s(att*l) was needed.
    mean_lw = lw_ref[...] * inv_s                        # [B, Ld]
    gnorm2 = jnp.sum(g_fc * g_fc, axis=-1, keepdims=True) + 1e-6
    coef = jnp.sum(mean_lw * g_fc, axis=-1, keepdims=True) / gnorm2
    pooled = mean_lw - coef * g_fc                       # component ⟂ g_fc

    desc = (jnp.dot(pooled, wfl_ref[...], preferred_element_type=jnp.float32)
            + jnp.dot(g_fc, wfg_ref[...], preferred_element_type=jnp.float32)
            + bf_ref[...])
    o_ref[...] = (jnp.dot(desc, wc_ref[...],
                          preferred_element_type=jnp.float32)
                  + bc_ref[...])


# ----------------------------------------------------------------------------
# Parameter construction (deterministic, synthetic)
# ----------------------------------------------------------------------------

def init_params(key, in_ch, local_dim, global_dim, output_dim, num_classes):
    def dense(k, fan_in, fan_out):
        scale = 1.0 / jnp.sqrt(jnp.float32(fan_in))
        w = jax.random.normal(k, (fan_in, fan_out), jnp.float32) * scale
        b = jnp.zeros((fan_out,), jnp.float32)
        return w, b

    ks = jax.random.split(key, 7)
    p = {}
    p["w3"], p["b3"] = dense(ks[0], in_ch, local_dim)           # stage 3
    p["w4"], p["b4"] = dense(ks[1], local_dim, global_dim)      # stage 4
    p["wg"], p["bg"] = dense(ks[2], global_dim, local_dim)      # global FC
    p["wl"], p["bl"] = dense(ks[3], local_dim, local_dim)       # local 1x1
    p["wa"], p["ba"] = dense(ks[4], local_dim, 1)               # attention
    p["wf"], p["bf"] = dense(ks[5], 2 * local_dim, output_dim)  # whitening FC
    p["wc"], p["bc"] = dense(ks[6], output_dim, num_classes)    # classifier
    return p


# ----------------------------------------------------------------------------
# Forward pass (mirrors DOLGNetWrapper.forward(x, targets))
# ----------------------------------------------------------------------------

def dolg_forward(params, x_nchw, targets=None, *, tile_s=None,
                 spatial_splits=None):
    B, Cin, H, W = x_nchw.shape
    S = H * W
    Ld = params["w3"].shape[1]
    Gd = params["w4"].shape[1]
    Od = params["wf"].shape[1]
    Ncls = params["wc"].shape[1]

    cap = _tpu_vmem_capacity()
    if tile_s is None:
        tile_s = _pick_tile_s(S, cap)
    if spatial_splits is None:
        # v7x megacore: with B == 1 the batch axis alone cannot feed 2 cores.
        spatial_splits = 2 if B < 2 else 1

    n_s_base = pl.cdiv(S, tile_s)
    ns_inner = pl.cdiv(n_s_base, spatial_splits)
    n_s_total = ns_inner * spatial_splits
    S_pad = n_s_total * tile_s
    ragged = S_pad != S

    bf16 = jnp.bfloat16
    # NCHW -> [B, S, C] so 1x1 convs are MXU matmuls; bf16 activations.
    # TODO(synk): for very large images the XLA transpose could be folded into
    # the kernel by feeding (1, Cin, tile_s) blocks and contracting Cin.
    x = jnp.transpose(x_nchw, (0, 2, 3, 1)).reshape(B, S, Cin).astype(bf16)
    if ragged:
        x = jnp.pad(x, ((0, 0), (0, S_pad - S), (0, 0)))

    w3 = params["w3"].astype(bf16); b3 = params["b3"].reshape(1, Ld)
    w4 = params["w4"].astype(bf16); b4 = params["b4"].reshape(1, Gd)
    wl = params["wl"].astype(bf16); bl = params["bl"].reshape(1, Ld)
    wa = params["wa"].T.astype(jnp.float32)              # [1, Ld]
    ba = params["ba"].reshape(1, 1).astype(jnp.float32)

    # VMEM estimate: streamed input x2 (double-buffer), resident weights x1,
    # accumulator outputs x2, plus in-kernel temporaries (f3/f3b/f4/l/lw/xp).
    est = (2 * tile_s * Cin * 2
           + (Cin * Ld + Ld * Gd + Ld * Ld) * 2
           + (2 * Ld + Gd) * 4 + (Ld + Gd + Ld + 1) * 4
           + 2 * (Gd + Ld) * 4
           + tile_s * (14 * Ld + 8 * Gd + 8))
    vmem_bb = _vmem_request(est, cap)

    BP = B * spatial_splits
    gem_parts, lw_parts = pl.pallas_call(
        functools.partial(_backbone_kernel, tile_s=tile_s, s_valid=S,
                          ragged=ragged),
        out_shape=(jax.ShapeDtypeStruct((BP, 1, Gd), jnp.float32),
                   jax.ShapeDtypeStruct((BP, 1, Ld), jnp.float32)),
        grid=(B, spatial_splits, ns_inner),
        in_specs=[
            pl.BlockSpec((1, tile_s, Cin),
                         lambda b, p, s: (b, p * ns_inner + s, 0)),
            pl.BlockSpec((Cin, Ld), lambda b, p, s: (0, 0)),
            pl.BlockSpec((1, Ld), lambda b, p, s: (0, 0)),
            pl.BlockSpec((Ld, Gd), lambda b, p, s: (0, 0)),
            pl.BlockSpec((1, Gd), lambda b, p, s: (0, 0)),
            pl.BlockSpec((Ld, Ld), lambda b, p, s: (0, 0)),
            pl.BlockSpec((1, Ld), lambda b, p, s: (0, 0)),
            pl.BlockSpec((1, Ld), lambda b, p, s: (0, 0)),
            pl.BlockSpec((1, 1), lambda b, p, s: (0, 0)),
        ],
        out_specs=[
            pl.BlockSpec((1, 1, Gd),
                         lambda b, p, s: (b * spatial_splits + p, 0, 0)),
            pl.BlockSpec((1, 1, Ld),
                         lambda b, p, s: (b * spatial_splits + p, 0, 0)),
        ],
        compiler_params=pltpu.CompilerParams(
            dimension_semantics=("parallel", "parallel", "arbitrary"),
            vmem_limit_bytes=vmem_bb),
    )(x, w3, b3, w4, b4, wl, bl, wa, ba)

    # Combine per-split partial sums (tiny [B, splits, C] work -> XLA).
    gem_sum = gem_parts.reshape(B, spatial_splits, Gd).sum(axis=1)
    lw_sum = lw_parts.reshape(B, spatial_splits, Ld).sum(axis=1)

    # Fused head (single small launch).  Classifier output padded to a
    # multiple of 128 lanes -> unmasked lane-dense stores; sliced in XLA.
    Ncls_pad = ((Ncls + 127) // 128) * 128
    wc = params["wc"]
    bc = params["bc"]
    if Ncls_pad != Ncls:
        wc = jnp.pad(wc, ((0, 0), (0, Ncls_pad - Ncls)))
        bc = jnp.pad(bc, (0, Ncls_pad - Ncls))
    wf_l = params["wf"][:Ld]
    wf_g = params["wf"][Ld:]

    head_est = 2 * 4 * (B * (Gd + Ld + Ncls_pad) + Gd * Ld + 2 * Ld * Od
                        + Od * Ncls_pad + 2 * Ld + Od + Ncls_pad)
    logits_pad = pl.pallas_call(
        functools.partial(_head_kernel, inv_s=1.0 / S),
        out_shape=jax.ShapeDtypeStruct((B, Ncls_pad), jnp.float32),
        grid=(1,),
        in_specs=[
            pl.BlockSpec((B, Gd), lambda i: (0, 0)),
            pl.BlockSpec((B, Ld), lambda i: (0, 0)),
            pl.BlockSpec((Gd, Ld), lambda i: (0, 0)),
            pl.BlockSpec((1, Ld), lambda i: (0, 0)),
            pl.BlockSpec((Ld, Od), lambda i: (0, 0)),
            pl.BlockSpec((Ld, Od), lambda i: (0, 0)),
            pl.BlockSpec((1, Od), lambda i: (0, 0)),
            pl.BlockSpec((Od, Ncls_pad), lambda i: (0, 0)),
            pl.BlockSpec((1, Ncls_pad), lambda i: (0, 0)),
        ],
        out_specs=pl.BlockSpec((B, Ncls_pad), lambda i: (0, 0)),
        compiler_params=pltpu.CompilerParams(
            dimension_semantics=("arbitrary",),
            vmem_limit_bytes=_vmem_request(head_est, cap)),
    )(gem_sum, lw_sum, params["wg"], params["bg"].reshape(1, Ld),
      wf_l, wf_g, params["bf"].reshape(1, Od), wc, bc.reshape(1, Ncls_pad))

    logits = logits_pad[:, :Ncls] if Ncls_pad != Ncls else logits_pad

    if targets is None:
        return logits

    # Cross-entropy loss (training path) — small, plain JAX glue.
    logp = jax.nn.log_softmax(logits, axis=-1)
    onehot = jax.nn.one_hot(targets, Ncls, dtype=logp.dtype)
    loss = -jnp.mean(jnp.sum(onehot * logp, axis=-1))
    return loss, logits


# ----------------------------------------------------------------------------
# Demo
# ----------------------------------------------------------------------------

if __name__ == "__main__":
    # Small shapes consistent with the module's [B, C, H, W] input contract.
    B, C, H, W = 2, 4, 16, 16
    local_dim, global_dim, output_dim, num_classes = 32, 64, 32, 10

    key = jax.random.PRNGKey(0)
    k_x, k_p, k_x2 = jax.random.split(key, 3)
    x = jax.random.normal(k_x, (B, C, H, W), jnp.float32)
    targets = jnp.arange(B, dtype=jnp.int32) % num_classes

    params = init_params(k_p, C, local_dim, global_dim, output_dim,
                         num_classes)

    # Training path: tile_s=64 + spatial_splits=2 exercises the multi-tile
    # streaming reduction and the per-split partial-accumulator (megacore)
    # path: grid = (B, 2, 2).
    fwd = jax.jit(functools.partial(dolg_forward, tile_s=64, spatial_splits=2))
    loss, logits = fwd(params, x, targets)
    jax.block_until_ready((loss, logits))
    assert logits.shape == (B, num_classes)
    assert loss.shape == ()
    assert bool(jnp.isfinite(loss)) and bool(jnp.all(jnp.isfinite(logits)))

    # Inference path with a ragged spatial size (9x9 -> S=81, tile_s=32):
    # exercises the pad + in-kernel mask handling of the last partial tile.
    x2 = jax.random.normal(k_x2, (B, C, 9, 9), jnp.float32)
    fwd2 = jax.jit(functools.partial(dolg_forward, tile_s=32))
    logits2 = fwd2(params, x2)
    jax.block_until_ready(logits2)
    assert logits2.shape == (B, num_classes)
    assert bool(jnp.all(jnp.isfinite(logits2)))

    print("KERNEL_OK")
</pallas_src>

<mosaic_0001>
module attributes {stable_mosaic.version = 11 : i64} {
  func.func @_head_kernel(%arg0: i32, %arg1: memref<2x64xf32, #tpu.memory_space<vmem>>, %arg2: memref<2x32xf32, #tpu.memory_space<vmem>>, %arg3: memref<64x32xf32, #tpu.memory_space<vmem>>, %arg4: memref<1x32xf32, #tpu.memory_space<vmem>>, %arg5: memref<32x32xf32, #tpu.memory_space<vmem>>, %arg6: memref<32x32xf32, #tpu.memory_space<vmem>>, %arg7: memref<1x32xf32, #tpu.memory_space<vmem>>, %arg8: memref<32x128xf32, #tpu.memory_space<vmem>>, %arg9: memref<1x128xf32, #tpu.memory_space<vmem>>, %arg10: memref<2x128xf32, #tpu.memory_space<vmem>>) attributes {dimension_semantics = [#tpu.dimension_semantics<arbitrary>], iteration_bounds = array<i64: 1>, scalar_prefetch = 0 : i64, scratch_operands = 0 : i64, tpu.core_type = #tpu.core_type<tc>, window_params = [{pipeline_mode = #tpu.pipeline_mode<synchronous>, transform_indices = @transform_0, window_bounds = array<i64: 2, 64>}, {pipeline_mode = #tpu.pipeline_mode<synchronous>, transform_indices = @transform_1, window_bounds = array<i64: 2, 32>}, {pipeline_mode = #tpu.pipeline_mode<synchronous>, transform_indices = @transform_2, window_bounds = array<i64: 64, 32>}, {pipeline_mode = #tpu.pipeline_mode<synchronous>, transform_indices = @transform_3, window_bounds = array<i64: 1, 32>}, {pipeline_mode = #tpu.pipeline_mode<synchronous>, transform_indices = @transform_4, window_bounds = array<i64: 32, 32>}, {pipeline_mode = #tpu.pipeline_mode<synchronous>, transform_indices = @transform_5, window_bounds = array<i64: 32, 32>}, {pipeline_mode = #tpu.pipeline_mode<synchronous>, transform_indices = @transform_6, window_bounds = array<i64: 1, 32>}, {pipeline_mode = #tpu.pipeline_mode<synchronous>, transform_indices = @transform_7, window_bounds = array<i64: 32, 128>}, {pipeline_mode = #tpu.pipeline_mode<synchronous>, transform_indices = @transform_8, window_bounds = array<i64: 1, 128>}, {pipeline_mode = #tpu.pipeline_mode<synchronous>, transform_indices = @transform_9, window_bounds = array<i64: 2, 128>}]} {
    %c0 = arith.constant 0 : index
    %c0_0 = arith.constant 0 : index
    %0 = vector.load %arg1[%c0, %c0_0] : memref<2x64xf32, #tpu.memory_space<vmem>>, vector<2x64xf32>
    %cst = arith.constant 3.906250e-03 : f32
    %1 = vector.broadcast %cst : f32 to vector<2x64xf32>
    %2 = arith.mulf %0, %1 : vector<2x64xf32>
    %3 = math.log %2 : vector<2x64xf32>
    %cst_1 = arith.constant 0.333333343 : f32
    %4 = vector.broadcast %cst_1 : f32 to vector<2x64xf32>
    %5 = arith.mulf %3, %4 : vector<2x64xf32>
    %6 = math.exp %5 : vector<2x64xf32>
    %c0_2 = arith.constant 0 : index
    %c0_3 = arith.constant 0 : index
    %7 = vector.load %arg3[%c0_2, %c0_3] : memref<64x32xf32, #tpu.memory_space<vmem>>, vector<64x32xf32>
    %cst_4 = arith.constant dense<0.000000e+00> : vector<2x32xf32>
    %8 = tpu.matmul %6, %7, %cst_4 {dimension_numbers = #tpu.dot_dimension_numbers<[1], [0], [0], [1], [0, 0, 1, 1], [], []>} : vector<2x64xf32>, vector<64x32xf32>, vector<2x32xf32> -> vector<2x32xf32>
    %c0_5 = arith.constant 0 : index
    %c0_6 = arith.constant 0 : index
    %9 = vector.load %arg4[%c0_5, %c0_6] : memref<1x32xf32, #tpu.memory_space<vmem>>, vector<1x32xf32>
    %10 = vector.broadcast %9 : vector<1x32xf32> to vector<2x32xf32>
    %11 = arith.addf %8, %10 : vector<2x32xf32>
    %c0_7 = arith.constant 0 : index
    %c0_8 = arith.constant 0 : index
    %12 = vector.load %arg2[%c0_7, %c0_8] : memref<2x32xf32, #tpu.memory_space<vmem>>, vector<2x32xf32>
    %cst_9 = arith.constant 3.906250e-03 : f32
    %13 = vector.broadcast %cst_9 : f32 to vector<2x32xf32>
    %14 = arith.mulf %12, %13 : vector<2x32xf32>
    %15 = arith.mulf %11, %11 : vector<2x32xf32>
    %cst_10 = arith.constant dense<0.000000e+00> : vector<2xf32>
    %16 = vector.multi_reduction <add>, %15, %cst_10 [1] : vector<2x32xf32> to vector<2xf32>
    %17 = vector.shape_cast %16 : vector<2xf32> to vector<2x1xf32>
    %cst_11 = arith.constant 9.99999997E-7 : f32
    %18 = vector.broadcast %cst_11 : f32 to vector<2x1xf32>
    %19 = arith.addf %17, %18 : vector<2x1xf32>
    %20 = arith.mulf %14, %11 : vector<2x32xf32>
    %cst_12 = arith.constant dense<0.000000e+00> : vector<2xf32>
    %21 = vector.multi_reduction <add>, %20, %cst_12 [1] : vector<2x32xf32> to vector<2xf32>
    %22 = vector.shape_cast %21 : vector<2xf32> to vector<2x1xf32>
    %23 = arith.divf %22, %19 : vector<2x1xf32>
    %24 = vector.broadcast %23 : vector<2x1xf32> to vector<2x32xf32>
    %25 = arith.mulf %24, %11 : vector<2x32xf32>
    %26 = arith.subf %14, %25 : vector<2x32xf32>
    %c0_13 = arith.constant 0 : index
    %c0_14 = arith.constant 0 : index
    %27 = vector.load %arg5[%c0_13, %c0_14] : memref<32x32xf32, #tpu.memory_space<vmem>>, vector<32x32xf32>
    %cst_15 = arith.constant dense<0.000000e+00> : vector<2x32xf32>
    %28 = tpu.matmul %26, %27, %cst_15 {dimension_numbers = #tpu.dot_dimension_numbers<[1], [0], [0], [1], [0, 0, 1, 1], [], []>} : vector<2x32xf32>, vector<32x32xf32>, vector<2x32xf32> -> vector<2x32xf32>
    %c0_16 = arith.constant 0 : index
    %c0_17 = arith.constant 0 : index
    %29 = vector.load %arg6[%c0_16, %c0_17] : memref<32x32xf32, #tpu.memory_space<vmem>>, vector<32x32xf32>
    %cst_18 = arith.constant dense<0.000000e+00> : vector<2x32xf32>
    %30 = tpu.matmul %11, %29, %cst_18 {dimension_numbers = #tpu.dot_dimension_numbers<[1], [0], [0], [1], [0, 0, 1, 1], [], []>} : vector<2x32xf32>, vector<32x32xf32>, vector<2x32xf32> -> vector<2x32xf32>
    %31 = arith.addf %28, %30 : vector<2x32xf32>
    %c0_19 = arith.constant 0 : index
    %c0_20 = arith.constant 0 : index
    %32 = vector.load %arg7[%c0_19, %c0_20] : memref<1x32xf32, #tpu.memory_space<vmem>>, vector<1x32xf32>
    %33 = vector.broadcast %32 : vector<1x32xf32> to vector<2x32xf32>
    %34 = arith.addf %31, %33 : vector<2x32xf32>
    %c0_21 = arith.constant 0 : index
    %c0_22 = arith.constant 0 : index
    %35 = vector.load %arg8[%c0_21, %c0_22] : memref<32x128xf32, #tpu.memory_space<vmem>>, vector<32x128xf32>
    %cst_23 = arith.constant dense<0.000000e+00> : vector<2x128xf32>
    %36 = tpu.matmul %34, %35, %cst_23 {dimension_numbers = #tpu.dot_dimension_numbers<[1], [0], [0], [1], [0, 0, 1, 1], [], []>} : vector<2x32xf32>, vector<32x128xf32>, vector<2x128xf32> -> vector<2x128xf32>
    %c0_24 = arith.constant 0 : index
    %c0_25 = arith.constant 0 : index
    %37 = vector.load %arg9[%c0_24, %c0_25] : memref<1x128xf32, #tpu.memory_space<vmem>>, vector<1x128xf32>
    %38 = vector.broadcast %37 : vector<1x128xf32> to vector<2x128xf32>
    %39 = arith.addf %36, %38 : vector<2x128xf32>
    %c0_26 = arith.constant 0 : index
    %c0_27 = arith.constant 0 : index
    %40 = vector.load %arg10[%c0_26, %c0_27] : memref<2x128xf32, #tpu.memory_space<vmem>>, vector<2x128xf32>
    tpu.vector_store %arg10[%c0_26, %c0_27], %39 {strides = array<i32>} : memref<2x128xf32, #tpu.memory_space<vmem>>, vector<2x128xf32>,
    return
  }
  func.func @transform_0(%arg0: i32) -> (i32, i32) {
    %c0_i32 = arith.constant 0 : i32
    %c0_i32_0 = arith.constant 0 : i32
    %c0_i32_1 = arith.constant 0 : i32
    return %c0_i32, %c0_i32_0 : i32, i32
  }
  func.func @transform_1(%arg0: i32) -> (i32, i32) {
    %c0_i32 = arith.constant 0 : i32
    %c0_i32_0 = arith.constant 0 : i32
    %c0_i32_1 = arith.constant 0 : i32
    return %c0_i32, %c0_i32_0 : i32, i32
  }
  func.func @transform_2(%arg0: i32) -> (i32, i32) {
    %c0_i32 = arith.constant 0 : i32
    %c0_i32_0 = arith.constant 0 : i32
    %c0_i32_1 = arith.constant 0 : i32
    return %c0_i32, %c0_i32_0 : i32, i32
  }
  func.func @transform_3(%arg0: i32) -> (i32, i32) {
    %c0_i32 = arith.constant 0 : i32
    %c0_i32_0 = arith.constant 0 : i32
    %c0_i32_1 = arith.constant 0 : i32
    return %c0_i32, %c0_i32_0 : i32, i32
  }
  func.func @transform_4(%arg0: i32) -> (i32, i32) {
    %c0_i32 = arith.constant 0 : i32
    %c0_i32_0 = arith.constant 0 : i32
    %c0_i32_1 = arith.constant 0 : i32
    return %c0_i32, %c0_i32_0 : i32, i32
  }
  func.func @transform_5(%arg0: i32) -> (i32, i32) {
    %c0_i32 = arith.constant 0 : i32
    %c0_i32_0 = arith.constant 0 : i32
    %c0_i32_1 = arith.constant 0 : i32
    return %c0_i32, %c0_i32_0 : i32, i32
  }
  func.func @transform_6(%arg0: i32) -> (i32, i32) {
    %c0_i32 = arith.constant 0 : i32
    %c0_i32_0 = arith.constant 0 : i32
    %c0_i32_1 = arith.constant 0 : i32
    return %c0_i32, %c0_i32_0 : i32, i32
  }
  func.func @transform_7(%arg0: i32) -> (i32, i32) {
    %c0_i32 = arith.constant 0 : i32
    %c0_i32_0 = arith.constant 0 : i32
    %c0_i32_1 = arith.constant 0 : i32
    return %c0_i32, %c0_i32_0 : i32, i32
  }
  func.func @transform_8(%arg0: i32) -> (i32, i32) {
    %c0_i32 = arith.constant 0 : i32
    %c0_i32_0 = arith.constant 0 : i32
    %c0_i32_1 = arith.constant 0 : i32
    return %c0_i32, %c0_i32_0 : i32, i32
  }
  func.func @transform_9(%arg0: i32) -> (i32, i32) {
    %c0_i32 = arith.constant 0 : i32
    %c0_i32_0 = arith.constant 0 : i32
    %c0_i32_1 = arith.constant 0 : i32
    return %c0_i32, %c0_i32_0 : i32, i32
  }
}

module attributes {stable_mosaic.version = 11 : i64} {
  func.func @_backbone_kernel(%arg0: i32, %arg1: i32, %arg2: i32, %arg3: memref<1x64x4xbf16, #tpu.memory_space<vmem>>, %arg4: memref<4x32xbf16, #tpu.memory_space<vmem>>, %arg5: memref<1x32xf32, #tpu.memory_space<vmem>>, %arg6: memref<32x64xbf16, #tpu.memory_space<vmem>>, %arg7: memref<1x64xf32, #tpu.memory_space<vmem>>, %arg8: memref<32x32xbf16, #tpu.memory_space<vmem>>, %arg9: memref<1x32xf32, #tpu.memory_space<vmem>>, %arg10: memref<1x32xf32, #tpu.memory_space<vmem>>, %arg11: memref<1x1xf32, #tpu.memory_space<vmem>>, %arg12: memref<1x1x64xf32, #tpu.memory_space<vmem>>, %arg13: memref<1x1x32xf32, #tpu.memory_space<vmem>>) attributes {dimension_semantics = [#tpu.dimension_semantics<parallel>, #tpu.dimension_semantics<parallel>, #tpu.dimension_semantics<arbitrary>], iteration_bounds = array<i64: 2, 2, 2>, scalar_prefetch = 0 : i64, scratch_operands = 0 : i64, tpu.core_type = #tpu.core_type<tc>, window_params = [{transform_indices = @transform_0, window_bounds = array<i64: 1, 64, 4>}, {pipeline_mode = #tpu.pipeline_mode<synchronous>, transform_indices = @transform_1, window_bounds = array<i64: 4, 32>}, {pipeline_mode = #tpu.pipeline_mode<synchronous>, transform_indices = @transform_2, window_bounds = array<i64: 1, 32>}, {pipeline_mode = #tpu.pipeline_mode<synchronous>, transform_indices = @transform_3, window_bounds = array<i64: 32, 64>}, {pipeline_mode = #tpu.pipeline_mode<synchronous>, transform_indices = @transform_4, window_bounds = array<i64: 1, 64>}, {pipeline_mode = #tpu.pipeline_mode<synchronous>, transform_indices = @transform_5, window_bounds = array<i64: 32, 32>}, {pipeline_mode = #tpu.pipeline_mode<synchronous>, transform_indices = @transform_6, window_bounds = array<i64: 1, 32>}, {pipeline_mode = #tpu.pipeline_mode<synchronous>, transform_indices = @transform_7, window_bounds = array<i64: 1, 32>}, {pipeline_mode = #tpu.pipeline_mode<synchronous>, transform_indices = @transform_8, window_bounds = array<i64: 1, 1>}, {transform_indices = @transform_9, window_bounds = array<i64: 1, 1, 64>}, {transform_indices = @transform_10, window_bounds = array<i64: 1, 1, 32>}]} {
    %c0 = arith.constant 0 : index
    %c0_0 = arith.constant 0 : index
    %c0_1 = arith.constant 0 : index
    %0 = vector.load %arg3[%c0, %c0_0, %c0_1] : memref<1x64x4xbf16, #tpu.memory_space<vmem>>, vector<1x64x4xbf16>
    %1 = vector.shape_cast %0 : vector<1x64x4xbf16> to vector<64x4xbf16>
    %c0_2 = arith.constant 0 : index
    %c0_3 = arith.constant 0 : index
    %2 = vector.load %arg4[%c0_2, %c0_3] : memref<4x32xbf16, #tpu.memory_space<vmem>>, vector<4x32xbf16>
    %cst = arith.constant dense<0.000000e+00> : vector<64x32xf32>
    %3 = tpu.matmul %1, %2, %cst {dimension_numbers = #tpu.dot_dimension_numbers<[1], [0], [0], [1], [0, 0, 1, 1], [], []>} : vector<64x4xbf16>, vector<4x32xbf16>, vector<64x32xf32> -> vector<64x32xf32>
    %c0_4 = arith.constant 0 : index
    %c0_5 = arith.constant 0 : index
    %4 = vector.load %arg5[%c0_4, %c0_5] : memref<1x32xf32, #tpu.memory_space<vmem>>, vector<1x32xf32>
    %5 = vector.broadcast %4 : vector<1x32xf32> to vector<64x32xf32>
    %6 = arith.addf %3, %5 : vector<64x32xf32>
    %cst_6 = arith.constant 0.000000e+00 : f32
    %7 = vector.broadcast %cst_6 : f32 to vector<64x32xf32>
    %8 = arith.maximumf %6, %7 : vector<64x32xf32>
    %9 = arith.truncf %8 : vector<64x32xf32> to vector<64x32xbf16>
    %c0_7 = arith.constant 0 : index
    %c0_8 = arith.constant 0 : index
    %10 = vector.load %arg6[%c0_7, %c0_8] : memref<32x64xbf16, #tpu.memory_space<vmem>>, vector<32x64xbf16>
    %cst_9 = arith.constant dense<0.000000e+00> : vector<64x64xf32>
    %11 = tpu.matmul %9, %10, %cst_9 {dimension_numbers = #tpu.dot_dimension_numbers<[1], [0], [0], [1], [0, 0, 1, 1], [], []>} : vector<64x32xbf16>, vector<32x64xbf16>, vector<64x64xf32> -> vector<64x64xf32>
    %c0_10 = arith.constant 0 : index
    %c0_11 = arith.constant 0 : index
    %12 = vector.load %arg7[%c0_10, %c0_11] : memref<1x64xf32, #tpu.memory_space<vmem>>, vector<1x64xf32>
    %13 = vector.broadcast %12 : vector<1x64xf32> to vector<64x64xf32>
    %14 = arith.addf %11, %13 : vector<64x64xf32>
    %cst_12 = arith.constant 0.000000e+00 : f32
    %15 = vector.broadcast %cst_12 : f32 to vector<64x64xf32>
    %16 = arith.maximumf %14, %15 : vector<64x64xf32>
    %c0_13 = arith.constant 0 : index
    %c0_14 = arith.constant 0 : index
    %17 = vector.load %arg8[%c0_13, %c0_14] : memref<32x32xbf16, #tpu.memory_space<vmem>>, vector<32x32xbf16>
    %cst_15 = arith.constant dense<0.000000e+00> : vector<64x32xf32>
    %18 = tpu.matmul %9, %17, %cst_15 {dimension_numbers = #tpu.dot_dimension_numbers<[1], [0], [0], [1], [0, 0, 1, 1], [], []>} : vector<64x32xbf16>, vector<32x32xbf16>, vector<64x32xf32> -> vector<64x32xf32>
    %c0_16 = arith.constant 0 : index
    %c0_17 = arith.constant 0 : index
    %19 = vector.load %arg9[%c0_16, %c0_17] : memref<1x32xf32, #tpu.memory_space<vmem>>, vector<1x32xf32>
    %20 = vector.broadcast %19 : vector<1x32xf32> to vector<64x32xf32>
    %21 = arith.addf %18, %20 : vector<64x32xf32>
    %cst_18 = arith.constant 0.000000e+00 : f32
    %22 = vector.broadcast %cst_18 : f32 to vector<64x32xf32>
    %23 = arith.maximumf %21, %22 : vector<64x32xf32>
    %c0_19 = arith.constant 0 : index
    %c0_20 = arith.constant 0 : index
    %24 = vector.load %arg10[%c0_19, %c0_20] : memref<1x32xf32, #tpu.memory_space<vmem>>, vector<1x32xf32>
    %25 = vector.broadcast %24 : vector<1x32xf32> to vector<64x32xf32>
    %26 = arith.mulf %23, %25 : vector<64x32xf32>
    %cst_21 = arith.constant dense<0.000000e+00> : vector<64xf32>
    %27 = vector.multi_reduction <add>, %26, %cst_21 [1] : vector<64x32xf32> to vector<64xf32>
    %28 = vector.shape_cast %27 : vector<64xf32> to vector<64x1xf32>
    %c0_22 = arith.constant 0 : index
    %c0_23 = arith.constant 0 : index
    %29 = vector.load %arg11[%c0_22, %c0_23] : memref<1x1xf32, #tpu.memory_space<vmem>>, vector<1x1xf32>
    %30 = vector.broadcast %29 : vector<1x1xf32> to vector<64x1xf32>
    %31 = arith.addf %28, %30 : vector<64x1xf32>
    %32 = arith.negf %31 : vector<64x1xf32>
    %33 = math.exp %32 : vector<64x1xf32>
    %cst_24 = arith.constant 1.000000e+00 : f32
    %34 = vector.broadcast %cst_24 : f32 to vector<64x1xf32>
    %35 = arith.addf %34, %33 : vector<64x1xf32>
    %36 = arith.divf %34, %35 : vector<64x1xf32>
    %37 = vector.broadcast %36 : vector<64x1xf32> to vector<64x32xf32>
    %38 = arith.mulf %23, %37 : vector<64x32xf32>
    %cst_25 = arith.constant 9.99999997E-7 : f32
    %39 = vector.broadcast %cst_25 : f32 to vector<64x64xf32>
    %40 = arith.maximumf %16, %39 : vector<64x64xf32>
    %41 = arith.mulf %40, %40 : vector<64x64xf32>
    %42 = arith.mulf %41, %40 : vector<64x64xf32>
    %c0_i32 = arith.constant 0 : i32
    %43 = arith.cmpi eq, %arg2, %c0_i32 : i32
    %44 = arith.extui %43 : i1 to i32
    %c0_i32_26 = arith.constant 0 : i32
    %45 = arith.cmpi ne, %44, %c0_i32_26 : i32
    scf.if %45 {
      %cst_41 = arith.constant 0.000000e+00 : f32
      %58 = vector.broadcast %cst_41 : f32 to vector<1x1x64xf32>
      %c0_42 = arith.constant 0 : index
      %c0_43 = arith.constant 0 : index
      %c0_44 = arith.constant 0 : index
      %59 = vector.load %arg12[%c0_42, %c0_43, %c0_44] : memref<1x1x64xf32, #tpu.memory_space<vmem>>, vector<1x1x64xf32>
      tpu.vector_store %arg12[%c0_42, %c0_43, %c0_44], %58 {strides = array<i32>} : memref<1x1x64xf32, #tpu.memory_space<vmem>>, vector<1x1x64xf32>,
      %cst_45 = arith.constant 0.000000e+00 : f32
      %60 = vector.broadcast %cst_45 : f32 to vector<1x1x32xf32>
      %c0_46 = arith.constant 0 : index
      %c0_47 = arith.constant 0 : index
      %c0_48 = arith.constant 0 : index
      %61 = vector.load %arg13[%c0_46, %c0_47, %c0_48] : memref<1x1x32xf32, #tpu.memory_space<vmem>>, vector<1x1x32xf32>
      tpu.vector_store %arg13[%c0_46, %c0_47, %c0_48], %60 {strides = array<i32>} : memref<1x1x32xf32, #tpu.memory_space<vmem>>, vector<1x1x32xf32>,
    } else {
    }
    %c0_27 = arith.constant 0 : index
    %c0_28 = arith.constant 0 : index
    %c0_29 = arith.constant 0 : index
    %46 = vector.load %arg12[%c0_27, %c0_28, %c0_29] : memref<1x1x64xf32, #tpu.memory_space<vmem>>, vector<1x1x64xf32>
    %cst_30 = arith.constant dense<0.000000e+00> : vector<64xf32>
    %47 = vector.multi_reduction <add>, %42, %cst_30 [0] : vector<64x64xf32> to vector<64xf32>
    %48 = vector.shape_cast %47 : vector<64xf32> to vector<1x64xf32>
    %49 = vector.shape_cast %48 : vector<1x64xf32> to vector<1x1x64xf32>
    %50 = arith.addf %46, %49 : vector<1x1x64xf32>
    %c0_31 = arith.constant 0 : index
    %c0_32 = arith.constant 0 : index
    %c0_33 = arith.constant 0 : index
    %51 = vector.load %arg12[%c0_31, %c0_32, %c0_33] : memref<1x1x64xf32, #tpu.memory_space<vmem>>, vector<1x1x64xf32>
    tpu.vector_store %arg12[%c0_31, %c0_32, %c0_33], %50 {strides = array<i32>} : memref<1x1x64xf32, #tpu.memory_space<vmem>>, vector<1x1x64xf32>,
    %c0_34 = arith.constant 0 : index
    %c0_35 = arith.constant 0 : index
    %c0_36 = arith.constant 0 : index
    %52 = vector.load %arg13[%c0_34, %c0_35, %c0_36] : memref<1x1x32xf32, #tpu.memory_space<vmem>>, vector<1x1x32xf32>
    %cst_37 = arith.constant dense<0.000000e+00> : vector<32xf32>
    %53 = vector.multi_reduction <add>, %38, %cst_37 [0] : vector<64x32xf32> to vector<32xf32>
    %54 = vector.shape_cast %53 : vector<32xf32> to vector<1x32xf32>
    %55 = vector.shape_cast %54 : vector<1x32xf32> to vector<1x1x32xf32>
    %56 = arith.addf %52, %55 : vector<1x1x32xf32>
    %c0_38 = arith.constant 0 : index
    %c0_39 = arith.constant 0 : index
    %c0_40 = arith.constant 0 : index
    %57 = vector.load %arg13[%c0_38, %c0_39, %c0_40] : memref<1x1x32xf32, #tpu.memory_space<vmem>>, vector<1x1x32xf32>
    tpu.vector_store %arg13[%c0_38, %c0_39, %c0_40], %56 {strides = array<i32>} : memref<1x1x32xf32, #tpu.memory_space<vmem>>, vector<1x1x32xf32>,
    return
  }
  func.func @transform_0(%arg0: i32, %arg1: i32, %arg2: i32) -> (i32, i32, i32) {
    %c2_i32 = arith.constant 2 : i32
    %0 = arith.muli %arg1, %c2_i32 : i32
    %1 = arith.addi %0, %arg2 : i32
    %c0_i32 = arith.constant 0 : i32
    %c0_i32_0 = arith.constant 0 : i32
    return %arg0, %1, %c0_i32 : i32, i32, i32
  }
  func.func @transform_1(%arg0: i32, %arg1: i32, %arg2: i32) -> (i32, i32) {
    %c0_i32 = arith.constant 0 : i32
    %c0_i32_0 = arith.constant 0 : i32
    %c0_i32_1 = arith.constant 0 : i32
    return %c0_i32, %c0_i32_0 : i32, i32
  }
  func.func @transform_2(%arg0: i32, %arg1: i32, %arg2: i32) -> (i32, i32) {
    %c0_i32 = arith.constant 0 : i32
    %c0_i32_0 = arith.constant 0 : i32
    %c0_i32_1 = arith.constant 0 : i32
    return %c0_i32, %c0_i32_0 : i32, i32
  }
  func.func @transform_3(%arg0: i32, %arg1: i32, %arg2: i32) -> (i32, i32) {
    %c0_i32 = arith.constant 0 : i32
    %c0_i32_0 = arith.constant 0 : i32
    %c0_i32_1 = arith.constant 0 : i32
    return %c0_i32, %c0_i32_0 : i32, i32
  }
  func.func @transform_4(%arg0: i32, %arg1: i32, %arg2: i32) -> (i32, i32) {
    %c0_i32 = arith.constant 0 : i32
    %c0_i32_0 = arith.constant 0 : i32
    %c0_i32_1 = arith.constant 0 : i32
    return %c0_i32, %c0_i32_0 : i32, i32
  }
  func.func @transform_5(%arg0: i32, %arg1: i32, %arg2: i32) -> (i32, i32) {
    %c0_i32 = arith.constant 0 : i32
    %c0_i32_0 = arith.constant 0 : i32
    %c0_i32_1 = arith.constant 0 : i32
    return %c0_i32, %c0_i32_0 : i32, i32
  }
  func.func @transform_6(%arg0: i32, %arg1: i32, %arg2: i32) -> (i32, i32) {
    %c0_i32 = arith.constant 0 : i32
    %c0_i32_0 = arith.constant 0 : i32
    %c0_i32_1 = arith.constant 0 : i32
    return %c0_i32, %c0_i32_0 : i32, i32
  }
  func.func @transform_7(%arg0: i32, %arg1: i32, %arg2: i32) -> (i32, i32) {
    %c0_i32 = arith.constant 0 : i32
    %c0_i32_0 = arith.constant 0 : i32
    %c0_i32_1 = arith.constant 0 : i32
    return %c0_i32, %c0_i32_0 : i32, i32
  }
  func.func @transform_8(%arg0: i32, %arg1: i32, %arg2: i32) -> (i32, i32) {
    %c0_i32 = arith.constant 0 : i32
    %c0_i32_0 = arith.constant 0 : i32
    %c0_i32_1 = arith.constant 0 : i32
    return %c0_i32, %c0_i32_0 : i32, i32
  }
  func.func @transform_9(%arg0: i32, %arg1: i32, %arg2: i32) -> (i32, i32, i32) {
    %c2_i32 = arith.constant 2 : i32
    %0 = arith.muli %arg0, %c2_i32 : i32
    %1 = arith.addi %0, %arg1 : i32
    %c0_i32 = arith.constant 0 : i32
    %c0_i32_0 = arith.constant 0 : i32
    %c0_i32_1 = arith.constant 0 : i32
    return %1, %c0_i32, %c0_i32_0 : i32, i32, i32
  }
  func.func @transform_10(%arg0: i32, %arg1: i32, %arg2: i32) -> (i32, i32, i32) {
    %c2_i32 = arith.constant 2 : i32
    %0 = arith.muli %arg0, %c2_i32 : i32
    %1 = arith.addi %0, %arg1 : i32
    %c0_i32 = arith.constant 0 : i32
    %c0_i32_0 = arith.constant 0 : i32
    %c0_i32_1 = arith.constant 0 : i32
    return %1, %c0_i32, %c0_i32_0 : i32, i32, i32
  }
}

</mosaic_0001>

<llo_original>
// kernel: dolg_forward.3
$region0: #{dolg_forward.3}
  #allocation0 [shape = 'u32[]', space=smem, size = 0x4, offset = 0x4, fixed_abs, tag = 'smem constant byte address 0x4 - core index']
  #allocation1 [shape = 'u32[144,128]{1,0:T(1,128)}', space=vmem, size = 0x12000, scoped, tag = 'internal scratch']
  %s0 = inlined_call_operand.vmem [shape: f32[2,64], index: 0, kind: input, shape index: {}]
  %s1 = inlined_call_operand.vmem [shape: f32[2,32], index: 1, kind: input, shape index: {}]
  %s2 = inlined_call_operand.vmem [shape: f32[64,32], index: 2, kind: input, shape index: {}]
  %s3 = inlined_call_operand.vmem [shape: f32[1,32], index: 3, kind: input, shape index: {}]
  %s4 = inlined_call_operand.vmem [shape: f32[32,32], index: 4, kind: input, shape index: {}]
  %s5 = inlined_call_operand.vmem [shape: f32[32,32], index: 5, kind: input, shape index: {}]
  %s6 = inlined_call_operand.vmem [shape: f32[1,32], index: 6, kind: input, shape index: {}]
  %s7 = inlined_call_operand.vmem [shape: f32[32,128], index: 7, kind: input, shape index: {}]
  %s8 = inlined_call_operand.vmem [shape: f32[1,128], index: 8, kind: input, shape index: {}]
  %s9 = inlined_call_operand.vmem [shape: f32[2,128], index: 9, kind: output, shape index: {}]
  %s10 = sld [smem:[#allocation0]]
  $region46: #{dolg_forward.3} parent=0
    _
  %s12 = ssub.s32 1, %s10
  %s13 = scalar_select 0, %s12, %s10
  // Predicated region
  $region2: #{dolg_forward.3} parent=0 // pred_check
    _
  $region3: #{dolg_forward.3} parent=0 // pred_check_branch
    %15 = sbr.rel (0) target = $region5
  $region4: #{dolg_forward.3} parent=0 // pred_region
    _
  $region5: #{dolg_forward.3} parent=0 // pred_fallthru
    _
  // Predicated region
  $region6: #{dolg_forward.3} parent=0 // pred_check
    _
  $region7: #{dolg_forward.3} parent=0 // pred_check_branch
    %17 = sbr.rel (0) target = $region9
  $region8: #{dolg_forward.3} parent=0 // pred_region
    _
  $region9: #{dolg_forward.3} parent=0 // pred_fallthru
    _
  // Predicated region
  $region10: #{dolg_forward.3} parent=0 // pred_check
    _
  $region11: #{dolg_forward.3} parent=0 // pred_check_branch
    %19 = sbr.rel (0) target = $region13
  $region12: #{dolg_forward.3} parent=0 // pred_region
    _
  $region13: #{dolg_forward.3} parent=0 // pred_fallthru
    _
  // Predicated region
  $region14: #{dolg_forward.3} parent=0 // pred_check
    _
  $region15: #{dolg_forward.3} parent=0 // pred_check_branch
    %21 = sbr.rel (0) target = $region17
  $region16: #{dolg_forward.3} parent=0 // pred_region
    _
  $region17: #{dolg_forward.3} parent=0 // pred_fallthru
    _
  // Predicated region
  $region18: #{dolg_forward.3} parent=0 // pred_check
    _
  $region19: #{dolg_forward.3} parent=0 // pred_check_branch
    %23 = sbr.rel (0) target = $region21
  $region20: #{dolg_forward.3} parent=0 // pred_region
    _
  $region21: #{dolg_forward.3} parent=0 // pred_fallthru
    _
  // Predicated region
  $region22: #{dolg_forward.3} parent=0 // pred_check
    _
  $region23: #{dolg_forward.3} parent=0 // pred_check_branch
    %25 = sbr.rel (0) target = $region25
  $region24: #{dolg_forward.3} parent=0 // pred_region
    _
  $region25: #{dolg_forward.3} parent=0 // pred_fallthru
    _
  // Predicated region
  $region26: #{dolg_forward.3} parent=0 // pred_check
    _
  $region27: #{dolg_forward.3} parent=0 // pred_check_branch
    %27 = sbr.rel (0) target = $region29
  $region28: #{dolg_forward.3} parent=0 // pred_region
    _
  $region29: #{dolg_forward.3} parent=0 // pred_fallthru
    _
  // Predicated region
  $region30: #{dolg_forward.3} parent=0 // pred_check
    _
  $region31: #{dolg_forward.3} parent=0 // pred_check_branch
    %29 = sbr.rel (0) target = $region33
  $region32: #{dolg_forward.3} parent=0 // pred_region
    _
  $region33: #{dolg_forward.3} parent=0 // pred_fallthru
    _
  // Predicated region
  $region34: #{dolg_forward.3} parent=0 // pred_check
    _
  $region35: #{dolg_forward.3} parent=0 // pred_check_branch
    %31 = sbr.rel (0) target = $region37
  $region36: #{dolg_forward.3} parent=0 // pred_region
    _
  $region37: #{dolg_forward.3} parent=0 // pred_fallthru
    _
  %v32 = vld [vmem:[%s0] sm:$0x3]
  %v33 = vmul.f32 %v32, 0.00390625
  %v34 = vlog2.pop %v33
  %v35 = vmul.f32 %v34, 0.6931472
  %v36 = vmul.f32 %v35, 0.33333334
  %v37 = vmul.f32 %v36, 1.442695
  %v38 = vpow.pop %v37
  %v39 = vld [vmem:[%s2] sm:$0xff]
  %v40 = vld [vmem:[%s2 + $0x8] sm:$0xff]
  %v41 = vld [vmem:[%s2 + $0x10] sm:$0xff]
  %v42 = vld [vmem:[%s2 + $0x18] sm:$0xff]
  %v43 = vld [vmem:[%s2 + $0x20] sm:$0xff]
  %v44 = vld [vmem:[%s2 + $0x28] sm:$0xff]
  %v45 = vld [vmem:[%s2 + $0x30] sm:$0xff]
  %v46 = vld [vmem:[%s2 + $0x38] sm:$0xff]
  %v47 = vld [vmem:[%s3] sm:$0x1]
  %v49 = vlaneseq
  %v50 = vshrl.u32 %v49, 7
  %v51 = vsub.s32 0, %v50
  %v52 = vrot.slane %v47, %v51
  %vm54 = vcmask 523264
  %v56 = vsel %vm54, %v38, 0
  %58 = vmatprep.subr.mxu0 0.0
  %59 = vmatpush1.msra.mxu0 0.0
  %60 = vmatprep.subr.mxu0 0.0
  %61 = vmatpush1.msra.mxu0 0.0
  %62 = vmatprep.subr.mxu0 0.0
  %63 = vmatpush1.msra.mxu0 0.0
  %64 = vmatprep.subr.mxu0 0.0
  %65 = vmatpush1.msra.mxu0 0.0
  %66 = vmatprep.subr.mxu0 0.0
  %67 = vmatpush1.msra.mxu0 0.0
  %68 = vmatprep.subr.mxu0 0.0
  %69 = vmatpush1.msra.mxu0 0.0
  %70 = vmatprep.subr.mxu0 0.0
  %71 = vmatpush1.msra.mxu0 0.0
  %72 = vmatprep.subr.mxu0 0.0
  %73 = vmatpush1.msra.mxu0 0.0
  %74 = vmatprep.subr.mxu0 0.0
  %75 = vmatpush1.msra.mxu0 %v46
  %76 = vmatprep.subr.mxu0 0.0
  %77 = vmatpush1.msra.mxu0 %v45
  %78 = vmatprep.subr.mxu0 0.0
  %79 = vmatpush1.msra.mxu0 %v44
  %80 = vmatprep.subr.mxu0 0.0
  %81 = vmatpush1.msra.mxu0 %v43
  %82 = vmatprep.subr.mxu0 0.0
  %83 = vmatpush1.msra.mxu0 %v42
  %84 = vmatprep.subr.mxu0 0.0
  %85 = vmatpush1.msra.mxu0 %v41
  %86 = vmatprep.subr.mxu0 0.0
  %87 = vmatpush1.msra.mxu0 %v40
  %88 = vmatprep.subr.mxu0 0.0
  %89 = vmatpush1.msra.mxu0 %v39
  %90 = vmatprep.subr.mxu0 0.0
  %91 = vmatpush2.msra.mxu0 0.0
  %92 = vmatprep.subr.mxu0 0.0
  %93 = vmatpush2.msra.mxu0 0.0
  %94 = vmatprep.subr.mxu0 0.0
  %95 = vmatpush2.msra.mxu0 0.0
  %96 = vmatprep.subr.mxu0 0.0
  %97 = vmatpush2.msra.mxu0 0.0
  %98 = vmatprep.subr.mxu0 0.0
  %99 = vmatpush2.msra.mxu0 0.0
  %100 = vmatprep.subr.mxu0 0.0
  %101 = vmatpush2.msra.mxu0 0.0
  %102 = vmatprep.subr.mxu0 0.0
  %103 = vmatpush2.msra.mxu0 0.0
  %104 = vmatprep.subr.mxu0 0.0
  %105 = vmatpush2.msra.mxu0 0.0
  %106 = vmatprep.subr.mxu0 0.0
  %107 = vmatpush2.msra.mxu0 0.0
  %108 = vmatprep.subr.mxu0 0.0
  %109 = vmatpush2.msra.mxu0 0.0
  %110 = vmatprep.subr.mxu0 0.0
  %111 = vmatpush2.msra.mxu0 0.0
  %112 = vmatprep.subr.mxu0 0.0
  %113 = vmatpush2.msra.mxu0 0.0
  %114 = vmatprep.subr.mxu0 0.0
  %115 = vmatpush2.msra.mxu0 0.0
  %116 = vmatprep.subr.mxu0 0.0
  %117 = vmatpush2.msra.mxu0 0.0
  %118 = vmatprep.subr.mxu0 0.0
  %119 = vmatpush2.msra.mxu0 0.0
  %120 = vmatprep.subr.mxu0 0.0
  %121 = vmatpush2.msra.mxu0 0.0
  %122 = vmatprep.mubr.f32.mxu0 0.0
  %123 = vmatmul.mubr.f32.gmra.mxu0 %v56
  %v124 = vpop.f32.mrf.mxu0
  %v125 = vadd.f32 %v52, %v124
  %v126 = vpop.f32.mrf.mxu0
  %127 = vdwg.mxu0
  %v128 = vld [vmem:[%s1] sm:$0x3]
  %v129 = vmul.f32 %v128, 0.00390625
  %v130 = vmul.f32 %v125, %v125
  %vm131 = vcmask 254976
  %v132 = vsel %vm131, %v130, 0.0
  %133 = vadd.xlane.f32.xlu0 %v132
  %v134 = vpop.xlane.xlu0 %133
  %v135 = vadd.f32 %v134, 1e-06
  %v136 = vmul.f32 %v129, %v125
  %v137 = vsel %vm131, %v136, 0.0
  %138 = vadd.xlane.f32.xlu0 %v137
  %v139 = vpop.xlane.xlu0 %138
  %v140 = vrcp.pop %v135
  %v141 = vmul.f32 %v139, %v140
  %v142 = vmul.f32 %v141, %v125
  %v143 = vsub.f32 %v129, %v142
  %v144 = vld [vmem:[%s4] sm:$0xff]
  %v145 = vld [vmem:[%s4 + $0x8] sm:$0xff]
  %v146 = vld [vmem:[%s4 + $0x10] sm:$0xff]
  %v147 = vld [vmem:[%s4 + $0x18] sm:$0xff]
  %v148 = vld [vmem:[%s5] sm:$0xff]
  %v149 = vld [vmem:[%s5 + $0x8] sm:$0xff]
  %v150 = vld [vmem:[%s5 + $0x10] sm:$0xff]
  %v151 = vld [vmem:[%s5 + $0x18] sm:$0xff]
  %vm152 = vcmask 261120
  %v154 = vsel %vm152, %v125, 0
  %156 = vmatprep.subr.mxu0 0.0
  %157 = vmatpush1.msra.mxu0 0.0
  %158 = vmatprep.subr.mxu0 0.0
  %159 = vmatpush1.msra.mxu0 0.0
  %160 = vmatprep.subr.mxu0 0.0
  %161 = vmatpush1.msra.mxu0 0.0
  %162 = vmatprep.subr.mxu0 0.0
  %163 = vmatpush1.msra.mxu0 0.0
  %164 = vmatprep.subr.mxu0 0.0
  %165 = vmatpush1.msra.mxu0 0.0
  %166 = vmatprep.subr.mxu0 0.0
  %167 = vmatpush1.msra.mxu0 0.0
  %168 = vmatprep.subr.mxu0 0.0
  %169 = vmatpush1.msra.mxu0 0.0
  %170 = vmatprep.subr.mxu0 0.0
  %171 = vmatpush1.msra.mxu0 0.0
  %172 = vmatprep.subr.mxu0 0.0
  %173 = vmatpush1.msra.mxu0 0.0
  %174 = vmatprep.subr.mxu0 0.0
  %175 = vmatpush1.msra.mxu0 0.0
  %176 = vmatprep.subr.mxu0 0.0
  %177 = vmatpush1.msra.mxu0 0.0
  %178 = vmatprep.subr.mxu0 0.0
  %179 = vmatpush1.msra.mxu0 0.0
  %180 = vmatprep.subr.mxu0 0.0
  %181 = vmatpush1.msra.mxu0 %v151
  %182 = vmatprep.subr.mxu0 0.0
  %183 = vmatpush1.msra.mxu0 %v150
  %184 = vmatprep.subr.mxu0 0.0
  %185 = vmatpush1.msra.mxu0 %v149
  %186 = vmatprep.subr.mxu0 0.0
  %187 = vmatpush1.msra.mxu0 %v148
  %188 = vmatprep.subr.mxu0 0.0
  %189 = vmatpush2.msra.mxu0 0.0
  %190 = vmatprep.subr.mxu0 0.0
  %191 = vmatpush2.msra.mxu0 0.0
  %192 = vmatprep.subr.mxu0 0.0
  %193 = vmatpush2.msra.mxu0 0.0
  %194 = vmatprep.subr.mxu0 0.0
  %195 = vmatpush2.msra.mxu0 0.0
  %196 = vmatprep.subr.mxu0 0.0
  %197 = vmatpush2.msra.mxu0 0.0
  %198 = vmatprep.subr.mxu0 0.0
  %199 = vmatpush2.msra.mxu0 0.0
  %200 = vmatprep.subr.mxu0 0.0
  %201 = vmatpush2.msra.mxu0 0.0
  %202 = vmatprep.subr.mxu0 0.0
  %203 = vmatpush2.msra.mxu0 0.0
  %204 = vmatprep.subr.mxu0 0.0
  %205 = vmatpush2.msra.mxu0 0.0
  %206 = vmatprep.subr.mxu0 0.0
  %207 = vmatpush2.msra.mxu0 0.0
  %208 = vmatprep.subr.mxu0 0.0
  %209 = vmatpush2.msra.mxu0 0.0
  %210 = vmatprep.subr.mxu0 0.0
  %211 = vmatpush2.msra.mxu0 0.0
  %212 = vmatprep.subr.mxu0 0.0
  %213 = vmatpush2.msra.mxu0 0.0
  %214 = vmatprep.subr.mxu0 0.0
  %215 = vmatpush2.msra.mxu0 0.0
  %216 = vmatprep.subr.mxu0 0.0
  %217 = vmatpush2.msra.mxu0 0.0
  %218 = vmatprep.subr.mxu0 0.0
  %219 = vmatpush2.msra.mxu0 0.0
  %220 = vmatprep.mubr.f32.mxu0 0.0
  %221 = vmatmul.mubr.f32.gmra.mxu0 %v154
  %v222 = vpop.f32.mrf.mxu0
  %v223 = vadd.f32 0.0, %v222
  %v224 = vpop.f32.mrf.mxu0
  %225 = vdwg.mxu0
  %v227 = vsel %vm152, %v143, 0
  %229 = vmatprep.subr.mxu0 0.0
  %230 = vmatpush1.msra.mxu0 0.0
  %231 = vmatprep.subr.mxu0 0.0
  %232 = vmatpush1.msra.mxu0 0.0
  %233 = vmatprep.subr.mxu0 0.0
  %234 = vmatpush1.msra.mxu0 0.0
  %235 = vmatprep.subr.mxu0 0.0
  %236 = vmatpush1.msra.mxu0 0.0
  %237 = vmatprep.subr.mxu0 0.0
  %238 = vmatpush1.msra.mxu0 0.0
  %239 = vmatprep.subr.mxu0 0.0
  %240 = vmatpush1.msra.mxu0 0.0
  %241 = vmatprep.subr.mxu0 0.0
  %242 = vmatpush1.msra.mxu0 0.0
  %243 = vmatprep.subr.mxu0 0.0
  %244 = vmatpush1.msra.mxu0 0.0
  %245 = vmatprep.subr.mxu0 0.0
  %246 = vmatpush1.msra.mxu0 0.0
  %247 = vmatprep.subr.mxu0 0.0
  %248 = vmatpush1.msra.mxu0 0.0
  %249 = vmatprep.subr.mxu0 0.0
  %250 = vmatpush1.msra.mxu0 0.0
  %251 = vmatprep.subr.mxu0 0.0
  %252 = vmatpush1.msra.mxu0 0.0
  %253 = vmatprep.subr.mxu0 0.0
  %254 = vmatpush1.msra.mxu0 %v147
  %255 = vmatprep.subr.mxu0 0.0
  %256 = vmatpush1.msra.mxu0 %v146
  %257 = vmatprep.subr.mxu0 0.0
  %258 = vmatpush1.msra.mxu0 %v145
  %259 = vmatprep.subr.mxu0 0.0
  %260 = vmatpush1.msra.mxu0 %v144
  %261 = vmatprep.subr.mxu0 0.0
  %262 = vmatpush2.msra.mxu0 0.0
  %263 = vmatprep.subr.mxu0 0.0
  %264 = vmatpush2.msra.mxu0 0.0
  %265 = vmatprep.subr.mxu0 0.0
  %266 = vmatpush2.msra.mxu0 0.0
  %267 = vmatprep.subr.mxu0 0.0
  %268 = vmatpush2.msra.mxu0 0.0
  %269 = vmatprep.subr.mxu0 0.0
  %270 = vmatpush2.msra.mxu0 0.0
  %271 = vmatprep.subr.mxu0 0.0
  %272 = vmatpush2.msra.mxu0 0.0
  %273 = vmatprep.subr.mxu0 0.0
  %274 = vmatpush2.msra.mxu0 0.0
  %275 = vmatprep.subr.mxu0 0.0
  %276 = vmatpush2.msra.mxu0 0.0
  %277 = vmatprep.subr.mxu0 0.0
  %278 = vmatpush2.msra.mxu0 0.0
  %279 = vmatprep.subr.mxu0 0.0
  %280 = vmatpush2.msra.mxu0 0.0
  %281 = vmatprep.subr.mxu0 0.0
  %282 = vmatpush2.msra.mxu0 0.0
  %283 = vmatprep.subr.mxu0 0.0
  %284 = vmatpush2.msra.mxu0 0.0
  %285 = vmatprep.subr.mxu0 0.0
  %286 = vmatpush2.msra.mxu0 0.0
  %287 = vmatprep.subr.mxu0 0.0
  %288 = vmatpush2.msra.mxu0 0.0
  %289 = vmatprep.subr.mxu0 0.0
  %290 = vmatpush2.msra.mxu0 0.0
  %291 = vmatprep.subr.mxu0 0.0
  %292 = vmatpush2.msra.mxu0 0.0
  %293 = vmatprep.mubr.f32.mxu0 0.0
  %294 = vmatmul.mubr.f32.gmra.mxu0 %v227
  %v295 = vpop.f32.mrf.mxu0
  %v296 = vadd.f32 %v223, %v295
  %v297 = vpop.f32.mrf.mxu0
  %298 = vdwg.mxu0
  %v299 = vld [vmem:[%s6] sm:$0x1]
  %v301 = vlaneseq
  %v302 = vshrl.u32 %v301, 7
  %v303 = vsub.s32 0, %v302
  %v304 = vrot.slane %v299, %v303
  %v306 = vadd.f32 %v296, %v304
  %v307 = vld [vmem:[%s7] sm:$0xff]
  %v308 = vld [vmem:[%s7 + $0x8] sm:$0xff]
  %v309 = vld [vmem:[%s7 + $0x10] sm:$0xff]
  %v310 = vld [vmem:[%s7 + $0x18] sm:$0xff]
  %v311 = vld [vmem:[%s8] sm:$0x1]
  %v313 = vlaneseq
  %v314 = vshrl.u32 %v313, 7
  %v315 = vsub.s32 0, %v314
  %v316 = vrot.slane %v311, %v315
  %v319 = vsel %vm152, %v306, 0
  %321 = vmatprep.subr.mxu0 0.0
  %322 = vmatpush1.msra.mxu0 0.0
  %323 = vmatprep.subr.mxu0 0.0
  %324 = vmatpush1.msra.mxu0 0.0
  %325 = vmatprep.subr.mxu0 0.0
  %326 = vmatpush1.msra.mxu0 0.0
  %327 = vmatprep.subr.mxu0 0.0
  %328 = vmatpush1.msra.mxu0 0.0
  %329 = vmatprep.subr.mxu0 0.0
  %330 = vmatpush1.msra.mxu0 0.0
  %331 = vmatprep.subr.mxu0 0.0
  %332 = vmatpush1.msra.mxu0 0.0
  %333 = vmatprep.subr.mxu0 0.0
  %334 = vmatpush1.msra.mxu0 0.0
  %335 = vmatprep.subr.mxu0 0.0
  %336 = vmatpush1.msra.mxu0 0.0
  %337 = vmatprep.subr.mxu0 0.0
  %338 = vmatpush1.msra.mxu0 0.0
  %339 = vmatprep.subr.mxu0 0.0
  %340 = vmatpush1.msra.mxu0 0.0
  %341 = vmatprep.subr.mxu0 0.0
  %342 = vmatpush1.msra.mxu0 0.0
  %343 = vmatprep.subr.mxu0 0.0
  %344 = vmatpush1.msra.mxu0 0.0
  %345 = vmatprep.subr.mxu0 0.0
  %346 = vmatpush1.msra.mxu0 %v310
  %347 = vmatprep.subr.mxu0 0.0
  %348 = vmatpush1.msra.mxu0 %v309
  %349 = vmatprep.subr.mxu0 0.0
  %350 = vmatpush1.msra.mxu0 %v308
  %351 = vmatprep.subr.mxu0 0.0
  %352 = vmatpush1.msra.mxu0 %v307
  %353 = vmatprep.subr.mxu0 0.0
  %354 = vmatpush2.msra.mxu0 0.0
  %355 = vmatprep.subr.mxu0 0.0
  %356 = vmatpush2.msra.mxu0 0.0
  %357 = vmatprep.subr.mxu0 0.0
  %358 = vmatpush2.msra.mxu0 0.0
  %359 = vmatprep.subr.mxu0 0.0
  %360 = vmatpush2.msra.mxu0 0.0
  %361 = vmatprep.subr.mxu0 0.0
  %362 = vmatpush2.msra.mxu0 0.0
  %363 = vmatprep.subr.mxu0 0.0
  %364 = vmatpush2.msra.mxu0 0.0
  %365 = vmatprep.subr.mxu0 0.0
  %366 = vmatpush2.msra.mxu0 0.0
  %367 = vmatprep.subr.mxu0 0.0
  %368 = vmatpush2.msra.mxu0 0.0
  %369 = vmatprep.subr.mxu0 0.0
  %370 = vmatpush2.msra.mxu0 0.0
  %371 = vmatprep.subr.mxu0 0.0
  %372 = vmatpush2.msra.mxu0 0.0
  %373 = vmatprep.subr.mxu0 0.0
  %374 = vmatpush2.msra.mxu0 0.0
  %375 = vmatprep.subr.mxu0 0.0
  %376 = vmatpush2.msra.mxu0 0.0
  %377 = vmatprep.subr.mxu0 0.0
  %378 = vmatpush2.msra.mxu0 0.0
  %379 = vmatprep.subr.mxu0 0.0
  %380 = vmatpush2.msra.mxu0 0.0
  %381 = vmatprep.subr.mxu0 0.0
  %382 = vmatpush2.msra.mxu0 0.0
  %383 = vmatprep.subr.mxu0 0.0
  %384 = vmatpush2.msra.mxu0 0.0
  %385 = vmatprep.mubr.f32.mxu0 0.0
  %386 = vmatmul.mubr.f32.gmra.mxu0 %v319
  %v387 = vpop.f32.mrf.mxu0
  %v388 = vadd.f32 %v316, %v387
  %v389 = vpop.f32.mrf.mxu0
  %390 = vdwg.mxu0
  %391 = vst [vmem:[%s9] sm:$0x3] %v388
  // Predicated region
  $region38: #{dolg_forward.3} parent=0 // pred_check
    _
  $region39: #{dolg_forward.3} parent=0 // pred_check_branch
    %393 = sbr.rel (0) target = $region41
  $region40: #{dolg_forward.3} parent=0 // pred_region
    _
  $region41: #{dolg_forward.3} parent=0 // pred_fallthru
    _
  // Predicated region
  $region42: #{dolg_forward.3} parent=0 // pred_check
    _
  $region43: #{dolg_forward.3} parent=0 // pred_check_branch
    %395 = sbr.rel (0) target = $region45
  $region44: #{dolg_forward.3} parent=0 // pred_region
    _
  $region45: #{dolg_forward.3} parent=0 // pred_fallthru
    _

// kernel: dolg_forward.2
$region0: #{dolg_forward.2}
  #allocation0 [shape = 'u32[]', space=smem, size = 0x4, offset = 0x4, fixed_abs, tag = 'smem constant byte address 0x4 - core index']
  #allocation1 [shape = 'u32[144,128]{1,0:T(1,128)}', space=vmem, size = 0x12000, scoped, tag = 'internal scratch']
  #allocation2 [shape = 'f32[1,1]{1,0:T(1,128)S(1)}', space=vmem, size = 0x200, scoped, tag = 'scoped memory for dolg_forward.2']
  %s0 = inlined_call_operand.vmem [shape: bf16[2,256,4], index: 0, kind: input, shape index: {}]
  %s1 = inlined_call_operand.vmem [shape: bf16[4,32], index: 1, kind: input, shape index: {}]
  %s2 = inlined_call_operand.vmem [shape: f32[1,32], index: 2, kind: input, shape index: {}]
  %s3 = inlined_call_operand.vmem [shape: bf16[32,64], index: 3, kind: input, shape index: {}]
  %s4 = inlined_call_operand.vmem [shape: f32[1,64], index: 4, kind: input, shape index: {}]
  %s5 = inlined_call_operand.vmem [shape: bf16[32,32], index: 5, kind: input, shape index: {}]
  %s6 = inlined_call_operand.vmem [shape: f32[1,32], index: 6, kind: input, shape index: {}]
  %s7 = inlined_call_operand.vmem [shape: f32[1,32], index: 7, kind: input, shape index: {}]
  %s8 = inlined_call_operand.<no memory space> [shape: f32[1,1], index: 8, kind: input, shape index: {}]
  %s9 = inlined_call_operand.vmem [shape: f32[4,1,64], index: 9, kind: output, shape index: {0}]
  %s10 = inlined_call_operand.vmem [shape: f32[4,1,32], index: 10, kind: output, shape index: {1}]
  %11 = xla_tuple %s9, %s10
  %s12 = sld [smem:[#allocation0]]
  $region81: #{dolg_forward.2} parent=0
    _
  %s14 = ssub.s32 1, %s12
  %s15 = scalar_select 0, %s14, %s12
  %v16 = vstv %s8
  %17 = vst [vmem:[#allocation2] sm:$0x1] %v16
  loop: start=0, step=1, limit=10
  $region2: #{dolg_forward.2} parent=0 // loop_pre_header
    _
  $region3: #{dolg_forward.2} parent=0 // loop_header
    %s19 = sphi 0, %s23
    %p20 = scmp.ge.s32.totalorder %s19, 10
    %s26 = sphi 0, %s45
    %s27 = sphi 0, %s41
    %s28 = sphi 0, %s37
    %s29 = sphi 0, %s26
    %s30 = sphi 0, %s27
    %s31 = sphi 0, %s28
    %s32 = sphi 0, %s29
    %s33 = sphi 0, %s30
    %s34 = sphi 0, %s31
    %s54 = sphi 0, %s56
    %s57 = sphi 0, %s54
    %s58 = sphi 0, %s57
    %s74 = sphi 0, %s58
    %s78 = sphi 0, %s78
    %s80 = sphi 0, %s78
    %s81 = sphi 0, %s80
    %s95 = sphi 0, %s81
    %s99 = sphi 0, %s99
    %s101 = sphi 0, %s99
    %s102 = sphi 0, %s101
    %s116 = sphi 0, %s102
    %s120 = sphi 0, %s120
    %s122 = sphi 0, %s120
    %s123 = sphi 0, %s122
    %s137 = sphi 0, %s123
    %s141 = sphi 0, %s141
    %s143 = sphi 0, %s141
    %s144 = sphi 0, %s143
    %s158 = sphi 0, %s144
    %s162 = sphi 0, %s162
    %s164 = sphi 0, %s162
    %s165 = sphi 0, %s164
    %s179 = sphi 0, %s165
    %s183 = sphi 0, %s183
    %s185 = sphi 0, %s183
    %s186 = sphi 0, %s185
    %s200 = sphi 0, %s186
    %s204 = sphi 0, %s204
    %s206 = sphi 0, %s204
    %s207 = sphi 0, %s206
    %s221 = sphi 0, %s207
    %s225 = sphi 0, %s225
    %s227 = sphi 0, %s225
    %s228 = sphi 0, %s227
    %s242 = sphi 0, %s228
    %s252 = sphi 0, %s254
    %s255 = sphi 0, %s252
    %s256 = sphi 0, %s255
    %s272 = sphi 0, %s256
    %s282 = sphi 0, %s284
    %s285 = sphi 0, %s282
    %s286 = sphi 0, %s285
    %s302 = sphi 0, %s286
  $region4: #{dolg_forward.2} parent=0 // loop_header_branch
    %22 = sbr.rel (%p20) target = $region8
  $region5: #{dolg_forward.2} parent=0 // loop_body
    %s24 = ssub.s32 %s19, 1
    %s25 = ssub.s32 %s19, 2
    %s35 = sadd.s32 1, %s28
    %p36 = scmp.ge.s32.totalorder %s35, 2
    %s37 = scalar_select %p36, 0, %s35
    %s38 = sadd.s32 1, %s27
    %s39 = scalar_select %p36, %s38, %s27
    %p40 = scmp.ge.s32.totalorder %s39, 2
    %s41 = scalar_select %p40, 0, %s39
    %s42 = sadd.s32 1, %s26
    %s43 = scalar_select %p40, %s42, %s26
    %p44 = scmp.ge.s32.totalorder %s43, 2
    %s45 = scalar_select %p44, 0, %s43
    %s46 = smul.u32 %s27, 2
    %s47 = sadd.s32 %s46, %s28
    %s48 = smul.u32 %s41, 2
    %s49 = sadd.s32 %s48, %s37
    %s50 = ssub.s32 %s26, %s45
    %s51 = ssub.s32 %s47, %s49
    %s52 = sor.u32 %s50, %s51
    %p53 = scmp.eq.s32.totalorder %s52, 0
    %s55 = sadd.s32 %s54, 1
    %s56 = scalar_select %p53, %s54, %s55
    %p59 = pneg %p53
    %p60 = scmp.eq.s32.totalorder %s19, 7
    %p61 = por %p59, %p60
    %p62 = scmp.ne.s32.totalorder %s54, %s57
    %p63 = scmp.eq.s32.totalorder %s19, 0
    %p64 = por %p62, %p63
    %p65 = scmp.ne.s32.totalorder %s54, %s57
    %p66 = scmp.eq.s32.totalorder %s24, 7
    %p67 = por %p65, %p66
    %p68 = scmp.ne.s32.totalorder %s57, %s58
    %p69 = scmp.eq.s32.totalorder %s24, 0
    %p70 = por %p68, %p69
    %p71 = scmp.ne.s32.totalorder %s57, %s58
    %p72 = scmp.eq.s32.totalorder %s25, 7
    %p73 = por %p71, %p72
    %p75 = scmp.ne.s32.totalorder %s58, %s74
    %p76 = scmp.eq.s32.totalorder %s25, 0
    %p77 = por %p75, %p76
    %s79 = sadd.s32 %s78, 1
    %p82 = scmp.eq.s32.totalorder %s19, 7
    %p83 = scmp.ne.s32.totalorder %s78, %s80
    %p84 = scmp.eq.s32.totalorder %s19, 0
    %p85 = por %p83, %p84
    %p86 = scmp.ne.s32.totalorder %s78, %s80
    %p87 = scmp.eq.s32.totalorder %s24, 7
    %p88 = por %p86, %p87
    %p89 = scmp.ne.s32.totalorder %s80, %s81
    %p90 = scmp.eq.s32.totalorder %s24, 0
    %p91 = por %p89, %p90
    %p92 = scmp.ne.s32.totalorder %s80, %s81
    %p93 = scmp.eq.s32.totalorder %s25, 7
    %p94 = por %p92, %p93
    %p96 = scmp.ne.s32.totalorder %s81, %s95
    %p97 = scmp.eq.s32.totalorder %s25, 0
    %p98 = por %p96, %p97
    %s100 = sadd.s32 %s99, 1
    %p103 = scmp.eq.s32.totalorder %s19, 7
    %p104 = scmp.ne.s32.totalorder %s99, %s101
    %p105 = scmp.eq.s32.totalorder %s19, 0
    %p106 = por %p104, %p105
    %p107 = scmp.ne.s32.totalorder %s99, %s101
    %p108 = scmp.eq.s32.totalorder %s24, 7
    %p109 = por %p107, %p108
    %p110 = scmp.ne.s32.totalorder %s101, %s102
    %p111 = scmp.eq.s32.totalorder %s24, 0
    %p112 = por %p110, %p111
    %p113 = scmp.ne.s32.totalorder %s101, %s102
    %p114 = scmp.eq.s32.totalorder %s25, 7
    %p115 = por %p113, %p114
    %p117 = scmp.ne.s32.totalorder %s102, %s116
    %p118 = scmp.eq.s32.totalorder %s25, 0
    %p119 = por %p117, %p118
    %s121 = sadd.s32 %s120, 1
    %p124 = scmp.eq.s32.totalorder %s19, 7
    %p125 = scmp.ne.s32.totalorder %s120, %s122
    %p126 = scmp.eq.s32.totalorder %s19, 0
    %p127 = por %p125, %p126
    %p128 = scmp.ne.s32.totalorder %s120, %s122
    %p129 = scmp.eq.s32.totalorder %s24, 7
    %p130 = por %p128, %p129
    %p131 = scmp.ne.s32.totalorder %s122, %s123
    %p132 = scmp.eq.s32.totalorder %s24, 0
    %p133 = por %p131, %p132
    %p134 = scmp.ne.s32.totalorder %s122, %s123
    %p135 = scmp.eq.s32.totalorder %s25, 7
    %p136 = por %p134, %p135
    %p138 = scmp.ne.s32.totalorder %s123, %s137
    %p139 = scmp.eq.s32.totalorder %s25, 0
    %p140 = por %p138, %p139
    %s142 = sadd.s32 %s141, 1
    %p145 = scmp.eq.s32.totalorder %s19, 7
    %p146 = scmp.ne.s32.totalorder %s141, %s143
    %p147 = scmp.eq.s32.totalorder %s19, 0
    %p148 = por %p146, %p147
    %p149 = scmp.ne.s32.totalorder %s141, %s143
    %p150 = scmp.eq.s32.totalorder %s24, 7
    %p151 = por %p149, %p150
    %p152 = scmp.ne.s32.totalorder %s143, %s144
    %p153 = scmp.eq.s32.totalorder %s24, 0
    %p154 = por %p152, %p153
    %p155 = scmp.ne.s32.totalorder %s143, %s144
    %p156 = scmp.eq.s32.totalorder %s25, 7
    %p157 = por %p155, %p156
    %p159 = scmp.ne.s32.totalorder %s144, %s158
    %p160 = scmp.eq.s32.totalorder %s25, 0
    %p161 = por %p159, %p160
    %s163 = sadd.s32 %s162, 1
    %p166 = scmp.eq.s32.totalorder %s19, 7
    %p167 = scmp.ne.s32.totalorder %s162, %s164
    %p168 = scmp.eq.s32.totalorder %s19, 0
    %p169 = por %p167, %p168
    %p170 = scmp.ne.s32.totalorder %s162, %s164
    %p171 = scmp.eq.s32.totalorder %s24, 7
    %p172 = por %p170, %p171
    %p173 = scmp.ne.s32.totalorder %s164, %s165
    %p174 = scmp.eq.s32.totalorder %s24, 0
    %p175 = por %p173, %p174
    %p176 = scmp.ne.s32.totalorder %s164, %s165
    %p177 = scmp.eq.s32.totalorder %s25, 7
    %p178 = por %p176, %p177
    %p180 = scmp.ne.s32.totalorder %s165, %s179
    %p181 = scmp.eq.s32.totalorder %s25, 0
    %p182 = por %p180, %p181
    %s184 = sadd.s32 %s183, 1
    %p187 = scmp.eq.s32.totalorder %s19, 7
    %p188 = scmp.ne.s32.totalorder %s183, %s185
    %p189 = scmp.eq.s32.totalorder %s19, 0
    %p190 = por %p188, %p189
    %p191 = scmp.ne.s32.totalorder %s183, %s185
    %p192 = scmp.eq.s32.totalorder %s24, 7
    %p193 = por %p191, %p192
    %p194 = scmp.ne.s32.totalorder %s185, %s186
    %p195 = scmp.eq.s32.totalorder %s24, 0
    %p196 = por %p194, %p195
    %p197 = scmp.ne.s32.totalorder %s185, %s186
    %p198 = scmp.eq.s32.totalorder %s25, 7
    %p199 = por %p197, %p198
    %p201 = scmp.ne.s32.totalorder %s186, %s200
    %p202 = scmp.eq.s32.totalorder %s25, 0
    %p203 = por %p201, %p202
    %s205 = sadd.s32 %s204, 1
    %p208 = scmp.eq.s32.totalorder %s19, 7
    %p209 = scmp.ne.s32.totalorder %s204, %s206
    %p210 = scmp.eq.s32.totalorder %s19, 0
    %p211 = por %p209, %p210
    %p212 = scmp.ne.s32.totalorder %s204, %s206
    %p213 = scmp.eq.s32.totalorder %s24, 7
    %p214 = por %p212, %p213
    %p215 = scmp.ne.s32.totalorder %s206, %s207
    %p216 = scmp.eq.s32.totalorder %s24, 0
    %p217 = por %p215, %p216
    %p218 = scmp.ne.s32.totalorder %s206, %s207
    %p219 = scmp.eq.s32.totalorder %s25, 7
    %p220 = por %p218, %p219
    %p222 = scmp.ne.s32.totalorder %s207, %s221
    %p223 = scmp.eq.s32.totalorder %s25, 0
    %p224 = por %p222, %p223
    %s226 = sadd.s32 %s225, 1
    %p229 = scmp.eq.s32.totalorder %s19, 7
    %p230 = scmp.ne.s32.totalorder %s225, %s227
    %p231 = scmp.eq.s32.totalorder %s19, 0
    %p232 = por %p230, %p231
    %p233 = scmp.ne.s32.totalorder %s225, %s227
    %p234 = scmp.eq.s32.totalorder %s24, 7
    %p235 = por %p233, %p234
    %p236 = scmp.ne.s32.totalorder %s227, %s228
    %p237 = scmp.eq.s32.totalorder %s24, 0
    %p238 = por %p236, %p237
    %p239 = scmp.ne.s32.totalorder %s227, %s228
    %p240 = scmp.eq.s32.totalorder %s25, 7
    %p241 = por %p239, %p240
    %p243 = scmp.ne.s32.totalorder %s228, %s242
    %p244 = scmp.eq.s32.totalorder %s25, 0
    %p245 = por %p243, %p244
    %s246 = smul.u32 %s26, 2
    %s247 = sadd.s32 %s246, %s27
    %s248 = smul.u32 %s45, 2
    %s249 = sadd.s32 %s248, %s41
    %s250 = ssub.s32 %s247, %s249
    %p251 = scmp.eq.s32.totalorder %s250, 0
    %s253 = sadd.s32 %s252, 1
    %s254 = scalar_select %p251, %s252, %s253
    %p257 = pneg %p251
    %p258 = scmp.eq.s32.totalorder %s19, 7
    %p259 = por %p257, %p258
    %p260 = scmp.ne.s32.totalorder %s252, %s255
    %p261 = scmp.eq.s32.totalorder %s19, 0
    %p262 = por %p260, %p261
    %p263 = scmp.ne.s32.totalorder %s252, %s255
    %p264 = scmp.eq.s32.totalorder %s24, 7
    %p265 = por %p263, %p264
    %p266 = scmp.ne.s32.totalorder %s255, %s256
    %p267 = scmp.eq.s32.totalorder %s24, 0
    %p268 = por %p266, %p267
    %p269 = scmp.ne.s32.totalorder %s255, %s256
    %p270 = scmp.eq.s32.totalorder %s25, 7
    %p271 = por %p269, %p270
    %p273 = scmp.ne.s32.totalorder %s256, %s272
    %p274 = scmp.eq.s32.totalorder %s25, 0
    %p275 = por %p273, %p274
    %s276 = smul.u32 %s26, 2
    %s277 = sadd.s32 %s276, %s27
    %s278 = smul.u32 %s45, 2
    %s279 = sadd.s32 %s278, %s41
    %s280 = ssub.s32 %s277, %s279
    %p281 = scmp.eq.s32.totalorder %s280, 0
    %s283 = sadd.s32 %s282, 1
    %s284 = scalar_select %p281, %s282, %s283
    %p287 = pneg %p281
    %p288 = scmp.eq.s32.totalorder %s19, 7
    %p289 = por %p287, %p288
    %p290 = scmp.ne.s32.totalorder %s282, %s285
    %p291 = scmp.eq.s32.totalorder %s19, 0
    %p292 = por %p290, %p291
    %p293 = scmp.ne.s32.totalorder %s282, %s285
    %p294 = scmp.eq.s32.totalorder %s24, 7
    %p295 = por %p293, %p294
    %p296 = scmp.ne.s32.totalorder %s285, %s286
    %p297 = scmp.eq.s32.totalorder %s24, 0
    %p298 = por %p296, %p297
    %p299 = scmp.ne.s32.totalorder %s285, %s286
    %p300 = scmp.eq.s32.totalorder %s25, 7
    %p301 = por %p299, %p300
    %p303 = scmp.ne.s32.totalorder %s286, %s302
    %p304 = scmp.eq.s32.totalorder %s25, 0
    %p305 = por %p303, %p304
    %p306 = scmp.le.s32.totalorder 1, %s19
    %p307 = scmp.lt.s32.totalorder %s19, 9
    %p308 = pnand %p306, %p307
    %p309 = pneg %p308
    // Predicated region
    $region9: #{dolg_forward.2} parent=5 // pred_check
      _
    $region10: #{dolg_forward.2} parent=5 // pred_check_branch
      %311 = sbr.rel (%p308) target = $region12
    $region11: #{dolg_forward.2} parent=5 // pred_region
      %s312 = ssub.s32 %s19, 1
      // Predicated region
      $region13: #{dolg_forward.2} parent=11 // pred_check
        %p313 = pneg %p91
      $region14: #{dolg_forward.2} parent=11 // pred_check_branch
        %315 = sbr.rel (%p313) target = $region16
      $region15: #{dolg_forward.2} parent=11 // pred_region
        _
      $region16: #{dolg_forward.2} parent=11 // pred_fallthru
        _
      // Predicated region
      $region17: #{dolg_forward.2} parent=11 // pred_check
        %p316 = pneg %p112
      $region18: #{dolg_forward.2} parent=11 // pred_check_branch
        %318 = sbr.rel (%p316) target = $region20
      $region19: #{dolg_forward.2} parent=11 // pred_region
        _
      $region20: #{dolg_forward.2} parent=11 // pred_fallthru
        _
      // Predicated region
      $region21: #{dolg_forward.2} parent=11 // pred_check
        %p319 = pneg %p133
      $region22: #{dolg_forward.2} parent=11 // pred_check_branch
        %321 = sbr.rel (%p319) target = $region24
      $region23: #{dolg_forward.2} parent=11 // pred_region
        _
      $region24: #{dolg_forward.2} parent=11 // pred_fallthru
        _
      // Predicated region
      $region25: #{dolg_forward.2} parent=11 // pred_check
        %p322 = pneg %p154
      $region26: #{dolg_forward.2} parent=11 // pred_check_branch
        %324 = sbr.rel (%p322) target = $region28
      $region27: #{dolg_forward.2} parent=11 // pred_region
        _
      $region28: #{dolg_forward.2} parent=11 // pred_fallthru
        _
      // Predicated region
      $region29: #{dolg_forward.2} parent=11 // pred_check
        %p325 = pneg %p175
      $region30: #{dolg_forward.2} parent=11 // pred_check_branch
        %327 = sbr.rel (%p325) target = $region32
      $region31: #{dolg_forward.2} parent=11 // pred_region
        _
      $region32: #{dolg_forward.2} parent=11 // pred_fallthru
        _
      // Predicated region
      $region33: #{dolg_forward.2} parent=11 // pred_check
        %p328 = pneg %p196
      $region34: #{dolg_forward.2} parent=11 // pred_check_branch
        %330 = sbr.rel (%p328) target = $region36
      $region35: #{dolg_forward.2} parent=11 // pred_region
        _
      $region36: #{dolg_forward.2} parent=11 // pred_fallthru
        _
      // Predicated region
      $region37: #{dolg_forward.2} parent=11 // pred_check
        %p331 = pneg %p217
      $region38: #{dolg_forward.2} parent=11 // pred_check_branch
        %333 = sbr.rel (%p331) target = $region40
      $region39: #{dolg_forward.2} parent=11 // pred_region
        _
      $region40: #{dolg_forward.2} parent=11 // pred_fallthru
        _
      // Predicated region
      $region41: #{dolg_forward.2} parent=11 // pred_check
        %p334 = pneg %p238
      $region42: #{dolg_forward.2} parent=11 // pred_check_branch
        %336 = sbr.rel (%p334) target = $region44
      $region43: #{dolg_forward.2} parent=11 // pred_region
        _
      $region44: #{dolg_forward.2} parent=11 // pred_fallthru
        _
    $region12: #{dolg_forward.2} parent=5 // pred_fallthru
      _
    %p337 = scmp.lt.s32.totalorder %s19, 8
    // Predicated region
    $region45: #{dolg_forward.2} parent=5 // pred_check
      %p338 = pneg %p337
    $region46: #{dolg_forward.2} parent=5 // pred_check_branch
      %340 = sbr.rel (%p338) target = $region48
    $region47: #{dolg_forward.2} parent=5 // pred_region
      // Predicated region
      $region49: #{dolg_forward.2} parent=47 // pred_check
        %p341 = pneg %p64
      $region50: #{dolg_forward.2} parent=47 // pred_check_branch
        %343 = sbr.rel (%p341) target = $region52
      $region51: #{dolg_forward.2} parent=47 // pred_region
        %s344 = smul.u32 %s27, 2
        %s345 = sadd.s32 %s344, %s28
        %s346 = smul.u32 8, %s345
        %p347 = scmp.lt.s32.totalorder %s26, 1
        %s348 = scalar_select %p347, %s26, 1
        %p349 = scmp.lt.s32.totalorder %s346, 31
        %s350 = scalar_select %p349, %s346, 31
        %s351 = smul.addr %s348, 32
        %s352 = sadd.s32 %s350, %s351
        %s353 = smul.addr %s352, 4
        %s354 = scalar_lea.vmem %s0, %s353
        %s355 = smul.u32 %s27, 2
        %s356 = sadd.s32 %s355, %s28
        %s357 = smul.u32 8, %s356
      $region52: #{dolg_forward.2} parent=47 // pred_fallthru
        _
    $region48: #{dolg_forward.2} parent=5 // pred_fallthru
      _
    %p358 = scmp.le.s32.totalorder 1, %s19
    %p359 = scmp.lt.s32.totalorder %s19, 9
    %p360 = pnand %p358, %p359
    %p361 = pneg %p360
    // Predicated region
    $region53: #{dolg_forward.2} parent=5 // pred_check
      _
    $region54: #{dolg_forward.2} parent=5 // pred_check_branch
      %363 = sbr.rel (%p360) target = $region56
    $region55: #{dolg_forward.2} parent=5 // pred_region
      %s364 = ssub.s32 %s19, 1
      %s365 = smul.u32 %s30, 2
      %s366 = sadd.s32 %s365, %s31
      %s367 = smul.u32 8, %s366
      %p368 = scmp.lt.s32.totalorder %s29, 1
      %s369 = scalar_select %p368, %s29, 1
      %p370 = scmp.lt.s32.totalorder %s367, 31
      %s371 = scalar_select %p370, %s367, 31
      %s372 = smul.addr %s369, 32
      %s373 = sadd.s32 %s371, %s372
      %s374 = smul.addr %s373, 4
      %s375 = scalar_lea.vmem %s0, %s374
      %p376 = pneg %p70
      %p377 = pneg %p67
      %p378 = pneg %p91
      %p379 = pneg %p88
      %p380 = pneg %p112
      %p381 = pneg %p109
      %p382 = pneg %p133
      %p383 = pneg %p130
      %p384 = pneg %p154
      %p385 = pneg %p151
      %p386 = pneg %p175
      %p387 = pneg %p172
      %p388 = pneg %p196
      %p389 = pneg %p193
      %p390 = pneg %p217
      %p391 = pneg %p214
      %p392 = pneg %p238
      %p393 = pneg %p235
      %p394 = pneg %p268
      %p395 = pneg %p265
      %s396 = smul.u32 %s29, 2
      %s397 = sadd.s32 %s396, %s30
      %p398 = scmp.lt.s32.totalorder %s397, 3
      %s399 = scalar_select %p398, %s397, 3
      %s400 = scalar_lea.vmem %s9, %s399
      %p401 = pneg %p298
      %p402 = pneg %p295
      %s403 = smul.u32 %s29, 2
      %s404 = sadd.s32 %s403, %s30
      %p405 = scmp.lt.s32.totalorder %s404, 3
      %s406 = scalar_select %p405, %s404, 3
      %s407 = scalar_lea.vmem %s10, %s406
      %s408 = smul.u32 %s30, 2
      %s409 = sadd.s32 %s408, %s31
      %s410 = smul.u32 8, %s409
      %p411 = scmp.lt.s32.totalorder %s29, 1
      %s412 = scalar_select %p411, %s29, 1
      %p413 = scmp.lt.s32.totalorder %s410, 31
      %s414 = scalar_select %p413, %s410, 31
      %s415 = smul.addr %s412, 32
      %s416 = sadd.s32 %s414, %s415
      %s417 = smul.addr %s416, 4
      %s418 = scalar_lea.vmem %s0, %s417
      %s419 = smul.u32 %s30, 2
      %s420 = sadd.s32 %s419, %s31
      %s421 = smul.u32 8, %s420
      %s422 = smul.u32 %s29, 2
      %s423 = sadd.s32 %s422, %s30
      %p424 = scmp.lt.s32.totalorder %s423, 3
      %s425 = scalar_select %p424, %s423, 3
      %s426 = scalar_lea.vmem %s9, %s425
      %s427 = smul.u32 %s29, 2
      %s428 = sadd.s32 %s427, %s30
      %s429 = smul.u32 %s29, 2
      %s430 = sadd.s32 %s429, %s30
      %p431 = scmp.lt.s32.totalorder %s430, 3
      %s432 = scalar_select %p431, %s430, 3
      %s433 = scalar_lea.vmem %s10, %s432
      %s434 = smul.u32 %s29, 2
      %s435 = sadd.s32 %s434, %s30
      %v437 = vld [vmem:[%s418] sm:$0xf]
      %v438 = vld [vmem:[%s418 + $0x4] sm:$0xf]
      %v439 = vld [vmem:[%s418 + $0x8] sm:$0xf]
      %v440 = vld [vmem:[%s418 + $0xc] sm:$0xf]
      %v441 = vld [vmem:[%s418 + $0x10] sm:$0xf]
      %v442 = vld [vmem:[%s418 + $0x14] sm:$0xf]
      %v443 = vld [vmem:[%s418 + $0x18] sm:$0xf]
      %v444 = vld [vmem:[%s418 + $0x1c] sm:$0xf]
      %v445 = vld [vmem:[%s1] sm:$0x3]
      %v446 = vld [vmem:[%s2] sm:$0x1]
      %v448 = vlaneseq
      %v449 = vshrl.u32 %v448, 7
      %v450 = vsub.s32 0, %v449
      %v451 = vrot.slane %v446, %v450
      %v461 = vunpack.c.l.b16 %v437
      %v462 = vunpack.c.l.b16 %v438
      %v463 = vunpack.c.l.b16 %v439
      %v464 = vunpack.c.l.b16 %v440
      %v465 = vunpack.c.l.b16 %v441
      %v466 = vunpack.c.l.b16 %v442
      %v467 = vunpack.c.l.b16 %v443
      %v468 = vunpack.c.l.b16 %v444
      %v469 = vpack.c.b16 %v462, %v461
      %v470 = vpack.c.b16 %v464, %v463
      %v471 = vpack.c.b16 %v466, %v465
      %v472 = vpack.c.b16 %v468, %v467
      %vm473 = vcmask 31744
      %v475 = vsel %vm473, %v469, 0
      %v478 = vsel %vm473, %v470, 0
      %v481 = vsel %vm473, %v471, 0
      %v484 = vsel %vm473, %v472, 0
      %vm486 = vcmask 1041408
      %v488 = vsel %vm486, %v445, 0
      %490 = vmatprep.subr.bf16.mxu0 0
      %491 = vmatpush1.bf16.msra.mxu0 0
      %492 = vmatprep.subr.bf16.mxu0 0
      %493 = vmatpush1.bf16.msra.mxu0 0
      %494 = vmatprep.subr.bf16.mxu0 0
      %495 = vmatpush1.bf16.msra.mxu0 0
      %496 = vmatprep.subr.bf16.mxu0 0
      %497 = vmatpush1.bf16.msra.mxu0 0
      %498 = vmatprep.subr.bf16.mxu0 0
      %499 = vmatpush1.bf16.msra.mxu0 0
      %500 = vmatprep.subr.bf16.mxu0 0
      %501 = vmatpush1.bf16.msra.mxu0 0
      %502 = vmatprep.subr.bf16.mxu0 0
      %503 = vmatpush1.bf16.msra.mxu0 0
      %504 = vmatprep.subr.bf16.mxu0 0
      %505 = vmatpush1.bf16.msra.mxu0 %v488
      %506 = vmatprep.subr.bf16.mxu0 0
      %507 = vmatpush2.bf16.msra.mxu0 0
      %508 = vmatprep.subr.bf16.mxu0 0
      %509 = vmatpush2.bf16.msra.mxu0 0
      %510 = vmatprep.subr.bf16.mxu0 0
      %511 = vmatpush2.bf16.msra.mxu0 0
      %512 = vmatprep.subr.bf16.mxu0 0
      %513 = vmatpush2.bf16.msra.mxu0 0
      %514 = vmatprep.subr.bf16.mxu0 0
      %515 = vmatpush2.bf16.msra.mxu0 0
      %516 = vmatprep.subr.bf16.mxu0 0
      %517 = vmatpush2.bf16.msra.mxu0 0
      %518 = vmatprep.subr.bf16.mxu0 0
      %519 = vmatpush2.bf16.msra.mxu0 0
      %520 = vmatprep.subr.bf16.mxu0 0
      %521 = vmatpush2.bf16.msra.mxu0 0
      %522 = vmatprep.mubr.bf16.mxu0 0
      %523 = vmatmul.mubr.bf16.gmra.mxu0 %v475
      %v524 = vpop.f32.mrf.mxu0
      %v525 = vadd.f32 %v451, %v524
      %v526 = vpop.f32.mrf.mxu0
      %v527 = vpop.f32.mrf.mxu0
      %v528 = vadd.f32 %v451, %v527
      %v529 = vpop.f32.mrf.mxu0
      %530 = vmatprep.mubr.bf16.mxu0 0
      %531 = vmatmul.mubr.bf16.gmra.mxu0 %v478
      %v532 = vpop.f32.mrf.mxu0
      %v533 = vadd.f32 %v451, %v532
      %v534 = vpop.f32.mrf.mxu0
      %v535 = vpop.f32.mrf.mxu0
      %v536 = vadd.f32 %v451, %v535
      %v537 = vpop.f32.mrf.mxu0
      %538 = vmatprep.mubr.bf16.mxu0 0
      %539 = vmatmul.mubr.bf16.gmra.mxu0 %v481
      %v540 = vpop.f32.mrf.mxu0
      %v541 = vadd.f32 %v451, %v540
      %v542 = vpop.f32.mrf.mxu0
      %v543 = vpop.f32.mrf.mxu0
      %v544 = vadd.f32 %v451, %v543
      %v545 = vpop.f32.mrf.mxu0
      %546 = vmatprep.mubr.bf16.mxu0 0
      %547 = vmatmul.mubr.bf16.gmra.mxu0 %v484
      %v548 = vpop.f32.mrf.mxu0
      %v549 = vadd.f32 %v451, %v548
      %v550 = vpop.f32.mrf.mxu0
      %v551 = vpop.f32.mrf.mxu0
      %v552 = vadd.f32 %v451, %v551
      %v553 = vpop.f32.mrf.mxu0
      %554 = vdwg.mxu0
      %v555 = vmax.f32 %v525, 0.0
      %v556 = vmax.f32 %v528, 0.0
      %v557 = vmax.f32 %v533, 0.0
      %v558 = vmax.f32 %v536, 0.0
      %v559 = vmax.f32 %v541, 0.0
      %v560 = vmax.f32 %v544, 0.0
      %v561 = vmax.f32 %v549, 0.0
      %v562 = vmax.f32 %v552, 0.0
      %v563 = vpack.c.bf16 %v556, %v555
      %v564 = vpack.c.bf16 %v558, %v557
      %v565 = vpack.c.bf16 %v560, %v559
      %v566 = vpack.c.bf16 %v562, %v561
      %v567 = vld [vmem:[%s3] sm:$0xf]
      %v568 = vld [vmem:[%s3 + $0x4] sm:$0xf]
      %v569 = vld [vmem:[%s3 + $0x8] sm:$0xf]
      %v570 = vld [vmem:[%s3 + $0xc] sm:$0xf]
      %v571 = vld [vmem:[%s4] sm:$0x1]
      %v573 = vlaneseq
      %v574 = vshrl.u32 %v573, 7
      %v575 = vsub.s32 0, %v574
      %v576 = vrot.slane %v571, %v575
      %v582 = vunpack.c.l.b16 %v567
      %v583 = vunpack.c.l.b16 %v568
      %v584 = vunpack.c.l.b16 %v569
      %v585 = vunpack.c.l.b16 %v570
      %v586 = vpack.c.b16 %v583, %v582
      %v587 = vpack.c.b16 %v585, %v584
      %vm590 = vcmask 261120
      %v592 = vsel %vm590, %v563, 0
      %v595 = vsel %vm590, %v564, 0
      %v598 = vsel %vm590, %v565, 0
      %v601 = vsel %vm590, %v566, 0
      %603 = vmatprep.subr.bf16.mxu0 0
      %604 = vmatpush1.bf16.msra.mxu0 0
      %605 = vmatprep.subr.bf16.mxu0 0
      %606 = vmatpush1.bf16.msra.mxu0 0
      %607 = vmatprep.subr.bf16.mxu0 0
      %608 = vmatpush1.bf16.msra.mxu0 0
      %609 = vmatprep.subr.bf16.mxu0 0
      %610 = vmatpush1.bf16.msra.mxu0 0
      %611 = vmatprep.subr.bf16.mxu0 0
      %612 = vmatpush1.bf16.msra.mxu0 0
      %613 = vmatprep.subr.bf16.mxu0 0
      %614 = vmatpush1.bf16.msra.mxu0 0
      %615 = vmatprep.subr.bf16.mxu0 0
      %616 = vmatpush1.bf16.msra.mxu0 %v587
      %617 = vmatprep.subr.bf16.mxu0 0
      %618 = vmatpush1.bf16.msra.mxu0 %v586
      %619 = vmatprep.subr.bf16.mxu0 0
      %620 = vmatpush2.bf16.msra.mxu0 0
      %621 = vmatprep.subr.bf16.mxu0 0
      %622 = vmatpush2.bf16.msra.mxu0 0
      %623 = vmatprep.subr.bf16.mxu0 0
      %624 = vmatpush2.bf16.msra.mxu0 0
      %625 = vmatprep.subr.bf16.mxu0 0
      %626 = vmatpush2.bf16.msra.mxu0 0
      %627 = vmatprep.subr.bf16.mxu0 0
      %628 = vmatpush2.bf16.msra.mxu0 0
      %629 = vmatprep.subr.bf16.mxu0 0
      %630 = vmatpush2.bf16.msra.mxu0 0
      %631 = vmatprep.subr.bf16.mxu0 0
      %632 = vmatpush2.bf16.msra.mxu0 0
      %633 = vmatprep.subr.bf16.mxu0 0
      %634 = vmatpush2.bf16.msra.mxu0 0
      %635 = vmatprep.mubr.bf16.mxu0 0
      %636 = vmatmul.mubr.bf16.gmra.mxu0 %v592
      %v637 = vpop.f32.mrf.mxu0
      %v638 = vadd.f32 %v576, %v637
      %v639 = vpop.f32.mrf.mxu0
      %v640 = vpop.f32.mrf.mxu0
      %v641 = vadd.f32 %v576, %v640
      %v642 = vpop.f32.mrf.mxu0
      %643 = vmatprep.mubr.bf16.mxu0 0
      %644 = vmatmul.mubr.bf16.gmra.mxu0 %v595
      %v645 = vpop.f32.mrf.mxu0
      %v646 = vadd.f32 %v576, %v645
      %v647 = vpop.f32.mrf.mxu0
      %v648 = vpop.f32.mrf.mxu0
      %v649 = vadd.f32 %v576, %v648
      %v650 = vpop.f32.mrf.mxu0
      %651 = vmatprep.mubr.bf16.mxu0 0
      %652 = vmatmul.mubr.bf16.gmra.mxu0 %v598
      %v653 = vpop.f32.mrf.mxu0
      %v654 = vadd.f32 %v576, %v653
      %v655 = vpop.f32.mrf.mxu0
      %v656 = vpop.f32.mrf.mxu0
      %v657 = vadd.f32 %v576, %v656
      %v658 = vpop.f32.mrf.mxu0
      %659 = vmatprep.mubr.bf16.mxu0 0
      %660 = vmatmul.mubr.bf16.gmra.mxu0 %v601
      %v661 = vpop.f32.mrf.mxu0
      %v662 = vadd.f32 %v576, %v661
      %v663 = vpop.f32.mrf.mxu0
      %v664 = vpop.f32.mrf.mxu0
      %v665 = vadd.f32 %v576, %v664
      %v666 = vpop.f32.mrf.mxu0
      %667 = vdwg.mxu0
      %v668 = vmax.f32 %v638, 0.0
      %v669 = vmax.f32 %v641, 0.0
      %v670 = vmax.f32 %v646, 0.0
      %v671 = vmax.f32 %v649, 0.0
      %v672 = vmax.f32 %v654, 0.0
      %v673 = vmax.f32 %v657, 0.0
      %v674 = vmax.f32 %v662, 0.0
      %v675 = vmax.f32 %v665, 0.0
      %v676 = vld [vmem:[%s5] sm:$0xf]
      %v677 = vld [vmem:[%s5 + $0x4] sm:$0xf]
      %v678 = vld [vmem:[%s5 + $0x8] sm:$0xf]
      %v679 = vld [vmem:[%s5 + $0xc] sm:$0xf]
      %v680 = vld [vmem:[%s6] sm:$0x1]
      %v682 = vlaneseq
      %v683 = vshrl.u32 %v682, 7
      %v684 = vsub.s32 0, %v683
      %v685 = vrot.slane %v680, %v684
      %v691 = vunpack.c.l.b16 %v676
      %v692 = vunpack.c.l.b16 %v677
      %v693 = vunpack.c.l.b16 %v678
      %v694 = vunpack.c.l.b16 %v679
      %v695 = vpack.c.b16 %v692, %v691
      %v696 = vpack.c.b16 %v694, %v693
      %699 = vmatprep.subr.bf16.mxu0 0
      %700 = vmatpush1.bf16.msra.mxu0 0
      %701 = vmatprep.subr.bf16.mxu0 0
      %702 = vmatpush1.bf16.msra.mxu0 0
      %703 = vmatprep.subr.bf16.mxu0 0
      %704 = vmatpush1.bf16.msra.mxu0 0
      %705 = vmatprep.subr.bf16.mxu0 0
      %706 = vmatpush1.bf16.msra.mxu0 0
      %707 = vmatprep.subr.bf16.mxu0 0
      %708 = vmatpush1.bf16.msra.mxu0 0
      %709 = vmatprep.subr.bf16.mxu0 0
      %710 = vmatpush1.bf16.msra.mxu0 0
      %711 = vmatprep.subr.bf16.mxu0 0
      %712 = vmatpush1.bf16.msra.mxu0 %v696
      %713 = vmatprep.subr.bf16.mxu0 0
      %714 = vmatpush1.bf16.msra.mxu0 %v695
      %715 = vmatprep.subr.bf16.mxu0 0
      %716 = vmatpush2.bf16.msra.mxu0 0
      %717 = vmatprep.subr.bf16.mxu0 0
      %718 = vmatpush2.bf16.msra.mxu0 0
      %719 = vmatprep.subr.bf16.mxu0 0
      %720 = vmatpush2.bf16.msra.mxu0 0
      %721 = vmatprep.subr.bf16.mxu0 0
      %722 = vmatpush2.bf16.msra.mxu0 0
      %723 = vmatprep.subr.bf16.mxu0 0
      %724 = vmatpush2.bf16.msra.mxu0 0
      %725 = vmatprep.subr.bf16.mxu0 0
      %726 = vmatpush2.bf16.msra.mxu0 0
      %727 = vmatprep.subr.bf16.mxu0 0
      %728 = vmatpush2.bf16.msra.mxu0 0
      %729 = vmatprep.subr.bf16.mxu0 0
      %730 = vmatpush2.bf16.msra.mxu0 0
      %731 = vmatprep.mubr.bf16.mxu0 0
      %732 = vmatmul.mubr.bf16.gmra.mxu0 %v592
      %v733 = vpop.f32.mrf.mxu0
      %v734 = vadd.f32 %v685, %v733
      %v735 = vpop.f32.mrf.mxu0
      %v736 = vpop.f32.mrf.mxu0
      %v737 = vadd.f32 %v685, %v736
      %v738 = vpop.f32.mrf.mxu0
      %739 = vmatprep.mubr.bf16.mxu0 0
      %740 = vmatmul.mubr.bf16.gmra.mxu0 %v595
      %v741 = vpop.f32.mrf.mxu0
      %v742 = vadd.f32 %v685, %v741
      %v743 = vpop.f32.mrf.mxu0
      %v744 = vpop.f32.mrf.mxu0
      %v745 = vadd.f32 %v685, %v744
      %v746 = vpop.f32.mrf.mxu0
      %747 = vmatprep.mubr.bf16.mxu0 0
      %748 = vmatmul.mubr.bf16.gmra.mxu0 %v598
      %v749 = vpop.f32.mrf.mxu0
      %v750 = vadd.f32 %v685, %v749
      %v751 = vpop.f32.mrf.mxu0
      %v752 = vpop.f32.mrf.mxu0
      %v753 = vadd.f32 %v685, %v752
      %v754 = vpop.f32.mrf.mxu0
      %755 = vmatprep.mubr.bf16.mxu0 0
      %756 = vmatmul.mubr.bf16.gmra.mxu0 %v601
      %v757 = vpop.f32.mrf.mxu0
      %v758 = vadd.f32 %v685, %v757
      %v759 = vpop.f32.mrf.mxu0
      %v760 = vpop.f32.mrf.mxu0
      %v761 = vadd.f32 %v685, %v760
      %v762 = vpop.f32.mrf.mxu0
      %763 = vdwg.mxu0
      %v764 = vmax.f32 %v734, 0.0
      %v765 = vmax.f32 %v737, 0.0
      %v766 = vmax.f32 %v742, 0.0
      %v767 = vmax.f32 %v745, 0.0
      %v768 = vmax.f32 %v750, 0.0
      %v769 = vmax.f32 %v753, 0.0
      %v770 = vmax.f32 %v758, 0.0
      %v771 = vmax.f32 %v761, 0.0
      %v772 = vld [vmem:[%s7] sm:$0x1]
      %v774 = vlaneseq
      %v775 = vshrl.u32 %v774, 7
      %v776 = vsub.s32 0, %v775
      %v777 = vrot.slane %v772, %v776
      %v779 = vmul.f32 %v764, %v777
      %v780 = vmul.f32 %v765, %v777
      %v781 = vmul.f32 %v766, %v777
      %v782 = vmul.f32 %v767, %v777
      %v783 = vmul.f32 %v768, %v777
      %v784 = vmul.f32 %v769, %v777
      %v785 = vmul.f32 %v770, %v777
      %v786 = vmul.f32 %v771, %v777
      %v787 = vsel %vm590, %v779, 0.0
      %788 = vadd.xlane.f32.xlu0 %v787
      %v789 = vpop.xlane.xlu0 %788
      %v790 = vsel %vm590, %v780, 0.0
      %791 = vadd.xlane.f32.xlu0 %v790
      %v792 = vpop.xlane.xlu0 %791
      %v793 = vsel %vm590, %v781, 0.0
      %794 = vadd.xlane.f32.xlu0 %v793
      %v795 = vpop.xlane.xlu0 %794
      %v796 = vsel %vm590, %v782, 0.0
      %797 = vadd.xlane.f32.xlu0 %v796
      %v798 = vpop.xlane.xlu0 %797
      %v799 = vsel %vm590, %v783, 0.0
      %800 = vadd.xlane.f32.xlu0 %v799
      %v801 = vpop.xlane.xlu0 %800
      %v802 = vsel %vm590, %v784, 0.0
      %803 = vadd.xlane.f32.xlu0 %v802
      %v804 = vpop.xlane.xlu0 %803
      %v805 = vsel %vm590, %v785, 0.0
      %806 = vadd.xlane.f32.xlu0 %v805
      %v807 = vpop.xlane.xlu0 %806
      %v808 = vsel %vm590, %v786, 0.0
      %809 = vadd.xlane.f32.xlu0 %v808
      %v810 = vpop.xlane.xlu0 %809
      %v811 = vld [vmem:[#allocation2] sm:$0x1]
      %v813 = vlaneseq
      %v814 = vshrl.u32 %v813, 7
      %v815 = vsub.s32 0, %v814
      %v816 = vrot.slane %v811, %v815
      %v818 = vadd.f32 %v789, %v816
      %v819 = vadd.f32 %v792, %v816
      %v820 = vadd.f32 %v795, %v816
      %v821 = vadd.f32 %v798, %v816
      %v822 = vadd.f32 %v801, %v816
      %v823 = vadd.f32 %v804, %v816
      %v824 = vadd.f32 %v807, %v816
      %v825 = vadd.f32 %v810, %v816
      %v826 = vxor.u32 %v818, 2147483648
      %v827 = vxor.u32 %v819, 2147483648
      %v828 = vxor.u32 %v820, 2147483648
      %v829 = vxor.u32 %v821, 2147483648
      %v830 = vxor.u32 %v822, 2147483648
      %v831 = vxor.u32 %v823, 2147483648
      %v832 = vxor.u32 %v824, 2147483648
      %v833 = vxor.u32 %v825, 2147483648
      %v834 = vmul.f32 %v826, 1.442695
      %v835 = vpow.pop %v834
      %v836 = vmul.f32 %v827, 1.442695
      %v837 = vpow.pop %v836
      %v838 = vmul.f32 %v828, 1.442695
      %v839 = vpow.pop %v838
      %v840 = vmul.f32 %v829, 1.442695
      %v841 = vpow.pop %v840
      %v842 = vmul.f32 %v830, 1.442695
      %v843 = vpow.pop %v842
      %v844 = vmul.f32 %v831, 1.442695
      %v845 = vpow.pop %v844
      %v846 = vmul.f32 %v832, 1.442695
      %v847 = vpow.pop %v846
      %v848 = vmul.f32 %v833, 1.442695
      %v849 = vpow.pop %v848
      %v850 = vadd.f32 %v835, 1.0
      %v851 = vadd.f32 %v837, 1.0
      %v852 = vadd.f32 %v839, 1.0
      %v853 = vadd.f32 %v841, 1.0
      %v854 = vadd.f32 %v843, 1.0
      %v855 = vadd.f32 %v845, 1.0
      %v856 = vadd.f32 %v847, 1.0
      %v857 = vadd.f32 %v849, 1.0
      %v858 = vrcp.pop %v850
      %v859 = vmul.f32 1.0, %v858
      %v860 = vrcp.pop %v851
      %v861 = vmul.f32 1.0, %v860
      %v862 = vrcp.pop %v852
      %v863 = vmul.f32 1.0, %v862
      %v864 = vrcp.pop %v853
      %v865 = vmul.f32 1.0, %v864
      %v866 = vrcp.pop %v854
      %v867 = vmul.f32 1.0, %v866
      %v868 = vrcp.pop %v855
      %v869 = vmul.f32 1.0, %v868
      %v870 = vrcp.pop %v856
      %v871 = vmul.f32 1.0, %v870
      %v872 = vrcp.pop %v857
      %v873 = vmul.f32 1.0, %v872
      %875 = vset.pattern.permute.xlu0 0
      %876 = vperm.xlu0 %875, %v859
      %v877 = vpop.permute.xlu0 %876
      %880 = vset.pattern.permute.xlu0 0
      %881 = vperm.xlu0 %880, %v861
      %v882 = vpop.permute.xlu0 %881
      %885 = vset.pattern.permute.xlu0 0
      %886 = vperm.xlu0 %885, %v863
      %v887 = vpop.permute.xlu0 %886
      %890 = vset.pattern.permute.xlu0 0
      %891 = vperm.xlu0 %890, %v865
      %v892 = vpop.permute.xlu0 %891
      %895 = vset.pattern.permute.xlu0 0
      %896 = vperm.xlu0 %895, %v867
      %v897 = vpop.permute.xlu0 %896
      %900 = vset.pattern.permute.xlu0 0
      %901 = vperm.xlu0 %900, %v869
      %v902 = vpop.permute.xlu0 %901
      %905 = vset.pattern.permute.xlu0 0
      %906 = vperm.xlu0 %905, %v871
      %v907 = vpop.permute.xlu0 %906
      %910 = vset.pattern.permute.xlu0 0
      %911 = vperm.xlu0 %910, %v873
      %v912 = vpop.permute.xlu0 %911
      %v914 = vmul.f32 %v764, %v877
      %v915 = vmul.f32 %v765, %v882
      %v916 = vmul.f32 %v766, %v887
      %v917 = vmul.f32 %v767, %v892
      %v918 = vmul.f32 %v768, %v897
      %v919 = vmul.f32 %v769, %v902
      %v920 = vmul.f32 %v770, %v907
      %v921 = vmul.f32 %v771, %v912
      %v922 = vmax.f32 %v668, 1e-06
      %v923 = vmax.f32 %v669, 1e-06
      %v924 = vmax.f32 %v670, 1e-06
      %v925 = vmax.f32 %v671, 1e-06
      %v926 = vmax.f32 %v672, 1e-06
      %v927 = vmax.f32 %v673, 1e-06
      %v928 = vmax.f32 %v674, 1e-06
      %v929 = vmax.f32 %v675, 1e-06
      %v930 = vmul.f32 %v922, %v922
      %v931 = vmul.f32 %v923, %v923
      %v932 = vmul.f32 %v924, %v924
      %v933 = vmul.f32 %v925, %v925
      %v934 = vmul.f32 %v926, %v926
      %v935 = vmul.f32 %v927, %v927
      %v936 = vmul.f32 %v928, %v928
      %v937 = vmul.f32 %v929, %v929
      %v938 = vmul.f32 %v930, %v922
      %v939 = vmul.f32 %v931, %v923
      %v940 = vmul.f32 %v932, %v924
      %v941 = vmul.f32 %v933, %v925
      %v942 = vmul.f32 %v934, %v926
      %v943 = vmul.f32 %v935, %v927
      %v944 = vmul.f32 %v936, %v928
      %v945 = vmul.f32 %v937, %v929
      %p946 = scmp.eq.s32.totalorder %s31, 0
      // Predicated region
      $region57: #{dolg_forward.2} parent=55 // pred_check
        %p947 = pneg %p946
      $region58: #{dolg_forward.2} parent=55 // pred_check_branch
        %949 = sbr.rel (%p947) target = $region60
      $region59: #{dolg_forward.2} parent=55 // pred_region
        %vm950 = vcmask 516096
        %951 = vst.msk [vmem:[%s426] sm:$0x1] %vm950, 0.0
        %vm952 = vcmask 253952
        %953 = vst.msk [vmem:[%s433] sm:$0x1] %vm952, 0.0
      $region60: #{dolg_forward.2} parent=55 // pred_fallthru
        _
      %v954 = vld [vmem:[%s426] sm:$0x1]
      %vm955 = vcmask 523264
      %v956 = vsel %vm955, %v938, 0.0
      %v957 = vsel %vm955, %v939, 0.0
      %v958 = vadd.f32 %v956, %v957
      %v959 = vsel %vm955, %v940, 0.0
      %v960 = vadd.f32 %v958, %v959
      %v961 = vsel %vm955, %v941, 0.0
      %v962 = vadd.f32 %v960, %v961
      %v963 = vsel %vm955, %v942, 0.0
      %v964 = vadd.f32 %v962, %v963
      %v965 = vsel %vm955, %v943, 0.0
      %v966 = vadd.f32 %v964, %v965
      %v967 = vsel %vm955, %v944, 0.0
      %v968 = vadd.f32 %v966, %v967
      %v969 = vsel %vm955, %v945, 0.0
      %v970 = vadd.f32 %v968, %v969
      %v971 = vrot.slane %v970, 4
      %v972 = vadd.f32 %v970, %v971
      %v973 = vrot.slane %v972, 2
      %v974 = vadd.f32 %v972, %v973
      %v975 = vrot.slane %v974, 1
      %v976 = vadd.f32 %v974, %v975
      %v977 = vadd.f32 %v954, %v976
      %vm978 = vcmask 516096
      %979 = vst.msk [vmem:[%s426] sm:$0x1] %vm978, %v977
      %v980 = vld [vmem:[%s433] sm:$0x1]
      %v981 = vsel %vm590, %v914, 0.0
      %v982 = vsel %vm590, %v915, 0.0
      %v983 = vadd.f32 %v981, %v982
      %v984 = vsel %vm590, %v916, 0.0
      %v985 = vadd.f32 %v983, %v984
      %v986 = vsel %vm590, %v917, 0.0
      %v987 = vadd.f32 %v985, %v986
      %v988 = vsel %vm590, %v918, 0.0
      %v989 = vadd.f32 %v987, %v988
      %v990 = vsel %vm590, %v919, 0.0
      %v991 = vadd.f32 %v989, %v990
      %v992 = vsel %vm590, %v920, 0.0
      %v993 = vadd.f32 %v991, %v992
      %v994 = vsel %vm590, %v921, 0.0
      %v995 = vadd.f32 %v993, %v994
      %v996 = vrot.slane %v995, 4
      %v997 = vadd.f32 %v995, %v996
      %v998 = vrot.slane %v997, 2
      %v999 = vadd.f32 %v997, %v998
      %v1000 = vrot.slane %v999, 1
      %v1001 = vadd.f32 %v999, %v1000
      %v1002 = vadd.f32 %v980, %v1001
      %vm1003 = vcmask 253952
      %1004 = vst.msk [vmem:[%s433] sm:$0x1] %vm1003, %v1002
      %s1005 = smul.u32 %s29, 2
      %s1006 = sadd.s32 %s1005, %s30
      %p1007 = scmp.lt.s32.totalorder %s1006, 3
      %s1008 = scalar_select %p1007, %s1006, 3
      %s1009 = scalar_lea.vmem %s9, %s1008
      %s1010 = smul.u32 %s29, 2
      %s1011 = sadd.s32 %s1010, %s30
      %p1012 = scmp.lt.s32.totalorder %s1011, 3
      %s1013 = scalar_select %p1012, %s1011, 3
      %s1014 = scalar_lea.vmem %s10, %s1013
      // Predicated region
      $region61: #{dolg_forward.2} parent=55 // pred_check
        %p1015 = pneg %p265
      $region62: #{dolg_forward.2} parent=55 // pred_check_branch
        %1017 = sbr.rel (%p1015) target = $region64
      $region63: #{dolg_forward.2} parent=55 // pred_region
        %s1018 = smul.u32 %s29, 2
        %s1019 = sadd.s32 %s1018, %s30
      $region64: #{dolg_forward.2} parent=55 // pred_fallthru
        _
      // Predicated region
      $region65: #{dolg_forward.2} parent=55 // pred_check
        %p1020 = pneg %p295
      $region66: #{dolg_forward.2} parent=55 // pred_check_branch
        %1022 = sbr.rel (%p1020) target = $region68
      $region67: #{dolg_forward.2} parent=55 // pred_region
        %s1023 = smul.u32 %s29, 2
        %s1024 = sadd.s32 %s1023, %s30
      $region68: #{dolg_forward.2} parent=55 // pred_fallthru
        _
    $region56: #{dolg_forward.2} parent=5 // pred_fallthru
      _
    %p1025 = scmp.le.s32.totalorder 2, %s19
    // Predicated region
    $region69: #{dolg_forward.2} parent=5 // pred_check
      %p1026 = pneg %p1025
    $region70: #{dolg_forward.2} parent=5 // pred_check_branch
      %1028 = sbr.rel (%p1026) target = $region72
    $region71: #{dolg_forward.2} parent=5 // pred_region
      %s1029 = ssub.s32 %s19, 2
      // Predicated region
      $region73: #{dolg_forward.2} parent=71 // pred_check
        %p1030 = pneg %p271
      $region74: #{dolg_forward.2} parent=71 // pred_check_branch
        %1032 = sbr.rel (%p1030) target = $region76
      $region75: #{dolg_forward.2} parent=71 // pred_region
        %s1033 = smul.u32 %s32, 2
        %s1034 = sadd.s32 %s1033, %s33
        %p1035 = scmp.lt.s32.totalorder %s1034, 3
        %s1036 = scalar_select %p1035, %s1034, 3
        %s1037 = scalar_lea.vmem %s9, %s1036
      $region76: #{dolg_forward.2} parent=71 // pred_fallthru
        _
      // Predicated region
      $region77: #{dolg_forward.2} parent=71 // pred_check
        %p1038 = pneg %p301
      $region78: #{dolg_forward.2} parent=71 // pred_check_branch
        %1040 = sbr.rel (%p1038) target = $region80
      $region79: #{dolg_forward.2} parent=71 // pred_region
        %s1041 = smul.u32 %s32, 2
        %s1042 = sadd.s32 %s1041, %s33
        %p1043 = scmp.lt.s32.totalorder %s1042, 3
        %s1044 = scalar_select %p1043, %s1042, 3
        %s1045 = scalar_lea.vmem %s10, %s1044
      $region80: #{dolg_forward.2} parent=71 // pred_fallthru
        _
    $region72: #{dolg_forward.2} parent=5 // pred_fallthru
      _
  $region6: #{dolg_forward.2} parent=0 // loop_footer
    %s23 = sadd.s32 1, %s19
  $region7: #{dolg_forward.2} parent=0 // loop_footer_branch
    %18 = sbr.rel target = $region3
  $region8: #{dolg_forward.2} parent=0 // loop_exit
    _

</llo_original>
